<compile_context>
chip_gen: v7x
topology: tpu7x:2x2x1
jax: 0.10.0
libtpu: 0.0.40
codegen_flags: <defaults>
</compile_context>

<pallas_src>
from functools import partial

import jax
import jax.numpy as jnp
from jax.experimental import pallas as pl
from jax.experimental.pallas import tpu as pltpu


def _round_up(v, m):
    return ((v + m - 1) // m) * m


def _gated_attn_kernel(x_ref, wab_ref, bab_ref, wc_ref, bc_ref, a_out_ref, *, d):
    # One fused (tile_n, L) @ (L, 2D) matmul for both gate branches.
    x = x_ref[...]  # native dtype straight into the MXU
    ab = jnp.dot(x, wab_ref[...], preferred_element_type=jnp.float32) + bab_ref[...]

    # Static, lane-aligned split (d is a multiple of 128 in practice).
    a = jnp.tanh(ab[:, :d])
    b = jax.nn.sigmoid(ab[:, d:])
    gated = (a * b).astype(wc_ref.dtype)  # (tile_n, D)

    # Final projection against the lane-padded (D, C_pad) weight -> lane-dense store.
    attn = jnp.dot(gated, wc_ref[...], preferred_element_type=jnp.float32) + bc_ref[...]
    a_out_ref[...] = attn.astype(a_out_ref.dtype)


def attn_net_gated(x, params, *, tile_n=256, vmem_limit_bytes=48 * 1024 * 1024):
    """Pallas forward pass. Returns (A, x) exactly like the PyTorch module."""
    wa, ba, wb, bb, wc, bc = (
        params["wa"], params["ba"], params["wb"], params["bb"],
        params["wc"], params["bc"],
    )
    N, L = x.shape
    D = wa.shape[1]
    C = wc.shape[1]

    # --- wrapper-side weight prep (cheap, done once under jit) -------------
    # Fuse the two gate linears into one wide matmul.
    w_ab = jnp.concatenate([wa, wb], axis=1)          # (L, 2D)
    b_ab = jnp.concatenate([ba, bb], axis=1)          # (1, 2D)

    # Pad the tiny n_classes dim up to a full 128-lane register.
    C_pad = max(128, _round_up(C, 128))
    wc_p = jnp.pad(wc, ((0, 0), (0, C_pad - C)))      # (D, C_pad)
    bc_p = jnp.pad(bc, ((0, 0), (0, C_pad - C)))      # (1, C_pad)

    # --- row tiling with padding instead of a divisibility assert ----------
    tile_n = max(8, min(_round_up(tile_n, 8), _round_up(N, 8)))
    N_pad = _round_up(N, tile_n)
    x_p = jnp.pad(x, ((0, N_pad - N), (0, 0))) if N_pad != N else x

    grid = (N_pad // tile_n,)

    A_pad = pl.pallas_call(
        partial(_gated_attn_kernel, d=D),
        out_shape=jax.ShapeDtypeStruct((N_pad, C_pad), x.dtype),
        grid_spec=pltpu.PrefetchScalarGridSpec(
            num_scalar_prefetch=0,
            grid=grid,
            in_specs=[
                pl.BlockSpec((tile_n, L), lambda i: (i, 0)),    # x tile
                pl.BlockSpec((L, 2 * D), lambda i: (0, 0)),     # Wa|Wb fused
                pl.BlockSpec((1, 2 * D), lambda i: (0, 0)),     # ba|bb fused
                pl.BlockSpec((D, C_pad), lambda i: (0, 0)),     # Wc (lane-padded)
                pl.BlockSpec((1, C_pad), lambda i: (0, 0)),     # bc (lane-padded)
            ],
            out_specs=pl.BlockSpec((tile_n, C_pad), lambda i: (i, 0)),
        ),
        compiler_params=pltpu.CompilerParams(
            dimension_semantics=("parallel",),
            vmem_limit_bytes=vmem_limit_bytes,
        ),
    )(x_p, w_ab, b_ab, wc_p, bc_p)

    # Strip row padding and lane padding; PyTorch forward also returns x unchanged.
    A = A_pad[:N, :C]
    return A, x


def init_params(key, L, D, n_classes, dtype=jnp.float32):
    """Deterministic synthetic init (uniform, roughly nn.Linear-style scaling)."""
    k = jax.random.split(key, 6)

    def lin(kw, kb, fan_in, fan_out):
        bound = 1.0 / jnp.sqrt(fan_in)
        w = jax.random.uniform(kw, (fan_in, fan_out), dtype, -bound, bound)
        b = jax.random.uniform(kb, (1, fan_out), dtype, -bound, bound)
        return w, b

    wa, ba = lin(k[0], k[1], L, D)
    wb, bb = lin(k[2], k[3], L, D)
    wc, bc = lin(k[4], k[5], D, n_classes)
    return {"wa": wa, "ba": ba, "wb": wb, "bb": bb, "wc": wc, "bc": bc}


def reference(x, p):
    a = jnp.tanh(x @ p["wa"] + p["ba"])
    b = jax.nn.sigmoid(x @ p["wb"] + p["bb"])
    return (a * b) @ p["wc"] + p["bc"]


if __name__ == "__main__":
    # Small shapes consistent with the module (L=1024, D=256 scaled down a bit).
    # N is deliberately NOT a multiple of the tile to exercise the padding path.
    N, L, D, n_classes = 300, 512, 256, 1

    key = jax.random.PRNGKey(0)
    kx, kp = jax.random.split(key)
    x = jax.random.normal(kx, (N, L), jnp.float32)
    params = init_params(kp, L, D, n_classes)

    A, x_out = attn_net_gated(x, params, tile_n=256)
    A = jax.block_until_ready(A)
    x_out = jax.block_until_ready(x_out)

    A_ref = reference(x, params)
    assert A.shape == (N, n_classes), A.shape
    assert x_out.shape == (N, L), x_out.shape
    assert jnp.allclose(A, A_ref, atol=1e-4, rtol=1e-4), float(
        jnp.max(jnp.abs(A - A_ref))
    )
    assert jnp.array_equal(x_out, x)

    print("KERNEL_OK")
</pallas_src>

<mosaic_0001>
module attributes {stable_mosaic.version = 11 : i64} {
  func.func @_gated_attn_kernel(%arg0: i32, %arg1: memref<256x512xf32, #tpu.memory_space<vmem>>, %arg2: memref<512x512xf32, #tpu.memory_space<vmem>>, %arg3: memref<1x512xf32, #tpu.memory_space<vmem>>, %arg4: memref<256x128xf32, #tpu.memory_space<vmem>>, %arg5: memref<1x128xf32, #tpu.memory_space<vmem>>, %arg6: memref<256x128xf32, #tpu.memory_space<vmem>>) attributes {dimension_semantics = [#tpu.dimension_semantics<parallel>], iteration_bounds = array<i64: 2>, scalar_prefetch = 0 : i64, scratch_operands = 0 : i64, tpu.core_type = #tpu.core_type<tc>, window_params = [{transform_indices = @transform_0, window_bounds = array<i64: 256, 512>}, {pipeline_mode = #tpu.pipeline_mode<synchronous>, transform_indices = @transform_1, window_bounds = array<i64: 512, 512>}, {pipeline_mode = #tpu.pipeline_mode<synchronous>, transform_indices = @transform_2, window_bounds = array<i64: 1, 512>}, {pipeline_mode = #tpu.pipeline_mode<synchronous>, transform_indices = @transform_3, window_bounds = array<i64: 256, 128>}, {pipeline_mode = #tpu.pipeline_mode<synchronous>, transform_indices = @transform_4, window_bounds = array<i64: 1, 128>}, {transform_indices = @transform_5, window_bounds = array<i64: 256, 128>}]} {
    %c0 = arith.constant 0 : index
    %c0_0 = arith.constant 0 : index
    %0 = vector.load %arg1[%c0, %c0_0] : memref<256x512xf32, #tpu.memory_space<vmem>>, vector<256x512xf32>
    %c0_1 = arith.constant 0 : index
    %c0_2 = arith.constant 0 : index
    %1 = vector.load %arg2[%c0_1, %c0_2] : memref<512x512xf32, #tpu.memory_space<vmem>>, vector<512x512xf32>
    %cst = arith.constant dense<0.000000e+00> : vector<256x512xf32>
    %2 = tpu.matmul %0, %1, %cst {dimension_numbers = #tpu.dot_dimension_numbers<[1], [0], [0], [1], [0, 0, 1, 1], [], []>} : vector<256x512xf32>, vector<512x512xf32>, vector<256x512xf32> -> vector<256x512xf32>
    %c0_3 = arith.constant 0 : index
    %c0_4 = arith.constant 0 : index
    %3 = vector.load %arg3[%c0_3, %c0_4] : memref<1x512xf32, #tpu.memory_space<vmem>>, vector<1x512xf32>
    %4 = vector.broadcast %3 : vector<1x512xf32> to vector<256x512xf32>
    %5 = arith.addf %2, %4 : vector<256x512xf32>
    %6 = vector.extract_strided_slice %5 {offsets = [0, 0], sizes = [256, 256], strides = [1, 1]} : vector<256x512xf32> to vector<256x256xf32>
    %7 = math.tanh %6 : vector<256x256xf32>
    %8 = vector.extract_strided_slice %5 {offsets = [0, 256], sizes = [256, 256], strides = [1, 1]} : vector<256x512xf32> to vector<256x256xf32>
    %9 = arith.negf %8 : vector<256x256xf32>
    %10 = math.exp %9 : vector<256x256xf32>
    %cst_5 = arith.constant 1.000000e+00 : f32
    %11 = vector.broadcast %cst_5 : f32 to vector<256x256xf32>
    %12 = arith.addf %11, %10 : vector<256x256xf32>
    %13 = arith.divf %11, %12 : vector<256x256xf32>
    %14 = arith.mulf %7, %13 : vector<256x256xf32>
    %c0_6 = arith.constant 0 : index
    %c0_7 = arith.constant 0 : index
    %15 = vector.load %arg4[%c0_6, %c0_7] : memref<256x128xf32, #tpu.memory_space<vmem>>, vector<256x128xf32>
    %cst_8 = arith.constant dense<0.000000e+00> : vector<256x128xf32>
    %16 = tpu.matmul %14, %15, %cst_8 {dimension_numbers = #tpu.dot_dimension_numbers<[1], [0], [0], [1], [0, 0, 1, 1], [], []>} : vector<256x256xf32>, vector<256x128xf32>, vector<256x128xf32> -> vector<256x128xf32>
    %c0_9 = arith.constant 0 : index
    %c0_10 = arith.constant 0 : index
    %17 = vector.load %arg5[%c0_9, %c0_10] : memref<1x128xf32, #tpu.memory_space<vmem>>, vector<1x128xf32>
    %18 = vector.broadcast %17 : vector<1x128xf32> to vector<256x128xf32>
    %19 = arith.addf %16, %18 : vector<256x128xf32>
    %c0_11 = arith.constant 0 : index
    %c0_12 = arith.constant 0 : index
    %20 = vector.load %arg6[%c0_11, %c0_12] : memref<256x128xf32, #tpu.memory_space<vmem>>, vector<256x128xf32>
    tpu.vector_store %arg6[%c0_11, %c0_12], %19 {strides = array<i32>} : memref<256x128xf32, #tpu.memory_space<vmem>>, vector<256x128xf32>,
    return
  }
  func.func @transform_0(%arg0: i32) -> (i32, i32) {
    %c0_i32 = arith.constant 0 : i32
    %c0_i32_0 = arith.constant 0 : i32
    return %arg0, %c0_i32 : i32, i32
  }
  func.func @transform_1(%arg0: i32) -> (i32, i32) {
    %c0_i32 = arith.constant 0 : i32
    %c0_i32_0 = arith.constant 0 : i32
    %c0_i32_1 = arith.constant 0 : i32
    return %c0_i32, %c0_i32_0 : i32, i32
  }
  func.func @transform_2(%arg0: i32) -> (i32, i32) {
    %c0_i32 = arith.constant 0 : i32
    %c0_i32_0 = arith.constant 0 : i32
    %c0_i32_1 = arith.constant 0 : i32
    return %c0_i32, %c0_i32_0 : i32, i32
  }
  func.func @transform_3(%arg0: i32) -> (i32, i32) {
    %c0_i32 = arith.constant 0 : i32
    %c0_i32_0 = arith.constant 0 : i32
    %c0_i32_1 = arith.constant 0 : i32
    return %c0_i32, %c0_i32_0 : i32, i32
  }
  func.func @transform_4(%arg0: i32) -> (i32, i32) {
    %c0_i32 = arith.constant 0 : i32
    %c0_i32_0 = arith.constant 0 : i32
    %c0_i32_1 = arith.constant 0 : i32
    return %c0_i32, %c0_i32_0 : i32, i32
  }
  func.func @transform_5(%arg0: i32) -> (i32, i32) {
    %c0_i32 = arith.constant 0 : i32
    %c0_i32_0 = arith.constant 0 : i32
    return %arg0, %c0_i32 : i32, i32
  }
}

</mosaic_0001>

<llo_original>
// kernel: tpu_custom_call.1
$region0: #{tpu_custom_call.1}
  #allocation0 [shape = 'u32[]', space=smem, size = 0x4, offset = 0x4, fixed_abs, tag = 'smem constant byte address 0x4 - core index']
  #allocation1 [shape = 'u32[144,128]{1,0:T(1,128)}', space=vmem, size = 0x12000, scoped, tag = 'internal scratch']
  %s0 = inlined_call_operand.hbm [shape: f32[512,512], index: 0, kind: input, shape index: {}]
  %s1 = inlined_call_operand.hbm [shape: f32[512,512], index: 1, kind: input, shape index: {}]
  %s2 = inlined_call_operand.vmem [shape: f32[1,512], index: 2, kind: input, shape index: {}]
  %s3 = inlined_call_operand.hbm [shape: f32[256,128], index: 3, kind: input, shape index: {}]
  %s4 = inlined_call_operand.vmem [shape: f32[1,128], index: 4, kind: input, shape index: {}]
  %s5 = inlined_call_operand.hbm [shape: f32[512,128], index: 5, kind: output, shape index: {}]
  %s6 = sld [smem:[#allocation0]]
  $region65: #{tpu_custom_call.1} parent=0
    _
  %s8 = ssub.s32 1, %s6
  %s9 = scalar_select 0, %s8, %s6
  $region1: #{tpu_custom_call.1} parent=0
    #allocation2 [shape = 'u8[1048576]{0}', space=vmem, size = 0x100000, scoped, tag = 'input window, operand 0']
    #allocation3 [shape = 's32[2]{0}', space=sflag, size = 0x8, scoped, tag = 'scoped memory for tpu_custom_call.1']
    #allocation4 [shape = 's32[2]{0}', space=sflag, size = 0x8, scoped, tag = 'scoped memory for tpu_custom_call.1']
    #allocation5 [shape = 'u8[1048576]{0}', space=vmem, size = 0x100000, scoped, tag = 'input window, operand 1, single buffered']
    #allocation6 [shape = 's32[1]{0}', space=sflag, size = 0x4, scoped, tag = 'scoped memory for tpu_custom_call.1']
    #allocation7 [shape = 'u8[131072]{0}', space=vmem, size = 0x20000, scoped, tag = 'input window, operand 3, single buffered']
    #allocation8 [shape = 'u8[262144]{0}', space=vmem, size = 0x40000, scoped, tag = 'output window, operand 0']
    %10 = vsyncpa [#allocation3], 0
    %s11 = scalar_lea.sflag [#allocation3], 1
    %12 = vsyncpa %s11, 0
    %13 = vsyncpa [#allocation6], 0
    %14 = vsyncpa [#allocation4], 0
    %s15 = scalar_lea.sflag [#allocation4], 1
    %16 = vsyncpa %s15, 0
    loop: start=0, step=1, limit=4
    $region2: #{tpu_custom_call.1} parent=1 // loop_pre_header
      _
    $region3: #{tpu_custom_call.1} parent=1 // loop_header
      %s18 = sphi 0, %s22
      %p19 = scmp.ge.s32.totalorder %s18, 4
      %s28 = sphi 0, %s30
      %s31 = sphi 0, %s28
      %s32 = sphi 0, %s31
      %s48 = sphi 0, %s32
      %s52 = sphi 0, %s52
      %s54 = sphi 0, %s52
      %s55 = sphi 0, %s54
      %s69 = sphi 0, %s55
      %s73 = sphi 0, %s73
      %s75 = sphi 0, %s73
      %s76 = sphi 0, %s75
      %s90 = sphi 0, %s76
      %s94 = sphi 0, %s94
      %s96 = sphi 0, %s94
      %s97 = sphi 0, %s96
      %s111 = sphi 0, %s97
      %s115 = sphi 0, %s115
      %s117 = sphi 0, %s115
      %s118 = sphi 0, %s117
      %s132 = sphi 0, %s118
      %s138 = sphi 0, %s140
      %s141 = sphi 0, %s138
      %s142 = sphi 0, %s141
      %s158 = sphi 0, %s142
    $region4: #{tpu_custom_call.1} parent=1 // loop_header_branch
      %21 = sbr.rel (%p19) target = $region8
    $region5: #{tpu_custom_call.1} parent=1 // loop_body
      %s23 = ssub.s32 %s18, 1
      %s24 = ssub.s32 %s18, 2
      %s25 = sadd.s32 %s18, 1
      %s26 = ssub.s32 %s18, %s25
      %p27 = scmp.eq.s32.totalorder %s26, 0
      %s29 = sadd.s32 %s28, 1
      %s30 = scalar_select %p27, %s28, %s29
      %p33 = pneg %p27
      %p34 = scmp.eq.s32.totalorder %s18, 1
      %p35 = por %p33, %p34
      %p36 = scmp.ne.s32.totalorder %s28, %s31
      %p37 = scmp.eq.s32.totalorder %s18, 0
      %p38 = por %p36, %p37
      %p39 = scmp.ne.s32.totalorder %s28, %s31
      %p40 = scmp.eq.s32.totalorder %s23, 1
      %p41 = por %p39, %p40
      %p42 = scmp.ne.s32.totalorder %s31, %s32
      %p43 = scmp.eq.s32.totalorder %s23, 0
      %p44 = por %p42, %p43
      %p45 = scmp.ne.s32.totalorder %s31, %s32
      %p46 = scmp.eq.s32.totalorder %s24, 1
      %p47 = por %p45, %p46
      %p49 = scmp.ne.s32.totalorder %s32, %s48
      %p50 = scmp.eq.s32.totalorder %s24, 0
      %p51 = por %p49, %p50
      %s53 = sadd.s32 %s52, 1
      %p56 = scmp.eq.s32.totalorder %s18, 1
      %p57 = scmp.ne.s32.totalorder %s52, %s54
      %p58 = scmp.eq.s32.totalorder %s18, 0
      %p59 = por %p57, %p58
      %p60 = scmp.ne.s32.totalorder %s52, %s54
      %p61 = scmp.eq.s32.totalorder %s23, 1
      %p62 = por %p60, %p61
      %p63 = scmp.ne.s32.totalorder %s54, %s55
      %p64 = scmp.eq.s32.totalorder %s23, 0
      %p65 = por %p63, %p64
      %p66 = scmp.ne.s32.totalorder %s54, %s55
      %p67 = scmp.eq.s32.totalorder %s24, 1
      %p68 = por %p66, %p67
      %p70 = scmp.ne.s32.totalorder %s55, %s69
      %p71 = scmp.eq.s32.totalorder %s24, 0
      %p72 = por %p70, %p71
      %s74 = sadd.s32 %s73, 1
      %p77 = scmp.eq.s32.totalorder %s18, 1
      %p78 = scmp.ne.s32.totalorder %s73, %s75
      %p79 = scmp.eq.s32.totalorder %s18, 0
      %p80 = por %p78, %p79
      %p81 = scmp.ne.s32.totalorder %s73, %s75
      %p82 = scmp.eq.s32.totalorder %s23, 1
      %p83 = por %p81, %p82
      %p84 = scmp.ne.s32.totalorder %s75, %s76
      %p85 = scmp.eq.s32.totalorder %s23, 0
      %p86 = por %p84, %p85
      %p87 = scmp.ne.s32.totalorder %s75, %s76
      %p88 = scmp.eq.s32.totalorder %s24, 1
      %p89 = por %p87, %p88
      %p91 = scmp.ne.s32.totalorder %s76, %s90
      %p92 = scmp.eq.s32.totalorder %s24, 0
      %p93 = por %p91, %p92
      %s95 = sadd.s32 %s94, 1
      %p98 = scmp.eq.s32.totalorder %s18, 1
      %p99 = scmp.ne.s32.totalorder %s94, %s96
      %p100 = scmp.eq.s32.totalorder %s18, 0
      %p101 = por %p99, %p100
      %p102 = scmp.ne.s32.totalorder %s94, %s96
      %p103 = scmp.eq.s32.totalorder %s23, 1
      %p104 = por %p102, %p103
      %p105 = scmp.ne.s32.totalorder %s96, %s97
      %p106 = scmp.eq.s32.totalorder %s23, 0
      %p107 = por %p105, %p106
      %p108 = scmp.ne.s32.totalorder %s96, %s97
      %p109 = scmp.eq.s32.totalorder %s24, 1
      %p110 = por %p108, %p109
      %p112 = scmp.ne.s32.totalorder %s97, %s111
      %p113 = scmp.eq.s32.totalorder %s24, 0
      %p114 = por %p112, %p113
      %s116 = sadd.s32 %s115, 1
      %p119 = scmp.eq.s32.totalorder %s18, 1
      %p120 = scmp.ne.s32.totalorder %s115, %s117
      %p121 = scmp.eq.s32.totalorder %s18, 0
      %p122 = por %p120, %p121
      %p123 = scmp.ne.s32.totalorder %s115, %s117
      %p124 = scmp.eq.s32.totalorder %s23, 1
      %p125 = por %p123, %p124
      %p126 = scmp.ne.s32.totalorder %s117, %s118
      %p127 = scmp.eq.s32.totalorder %s23, 0
      %p128 = por %p126, %p127
      %p129 = scmp.ne.s32.totalorder %s117, %s118
      %p130 = scmp.eq.s32.totalorder %s24, 1
      %p131 = por %p129, %p130
      %p133 = scmp.ne.s32.totalorder %s118, %s132
      %p134 = scmp.eq.s32.totalorder %s24, 0
      %p135 = por %p133, %p134
      %s136 = ssub.s32 %s18, %s25
      %p137 = scmp.eq.s32.totalorder %s136, 0
      %s139 = sadd.s32 %s138, 1
      %s140 = scalar_select %p137, %s138, %s139
      %p143 = pneg %p137
      %p144 = scmp.eq.s32.totalorder %s18, 1
      %p145 = por %p143, %p144
      %p146 = scmp.ne.s32.totalorder %s138, %s141
      %p147 = scmp.eq.s32.totalorder %s18, 0
      %p148 = por %p146, %p147
      %p149 = scmp.ne.s32.totalorder %s138, %s141
      %p150 = scmp.eq.s32.totalorder %s23, 1
      %p151 = por %p149, %p150
      %p152 = scmp.ne.s32.totalorder %s141, %s142
      %p153 = scmp.eq.s32.totalorder %s23, 0
      %p154 = por %p152, %p153
      %p155 = scmp.ne.s32.totalorder %s141, %s142
      %p156 = scmp.eq.s32.totalorder %s24, 1
      %p157 = por %p155, %p156
      %p159 = scmp.ne.s32.totalorder %s142, %s158
      %p160 = scmp.eq.s32.totalorder %s24, 0
      %p161 = por %p159, %p160
      %p162 = scmp.le.s32.totalorder 1, %s18
      %p163 = scmp.lt.s32.totalorder %s18, 3
      %p164 = pnand %p162, %p163
      %p165 = pneg %p164
      // Predicated region
      $region9: #{tpu_custom_call.1} parent=5 // pred_check
        _
      $region10: #{tpu_custom_call.1} parent=5 // pred_check_branch
        %167 = sbr.rel (%p164) target = $region12
      $region11: #{tpu_custom_call.1} parent=5 // pred_region
        %s168 = ssub.s32 %s18, 1
        // Predicated region
        $region13: #{tpu_custom_call.1} parent=11 // pred_check
          %p169 = pneg %p65
        $region14: #{tpu_custom_call.1} parent=11 // pred_check_branch
          %171 = sbr.rel (%p169) target = $region16
        $region15: #{tpu_custom_call.1} parent=11 // pred_region
          %s173 = ssub.s32 32768, 32768
          %174 = vsyncadd [#allocation6], %s173
          %s175 = sshll.u32 [#allocation5], 4
          %s176 = int_to_ptr.vmem [resolvable:$true] %s175
          %181 = dma.hbm_to_vmem [thread:$0]  %s1, 32768, %s176, [#allocation6], 512, 512, 32
        $region16: #{tpu_custom_call.1} parent=11 // pred_fallthru
          _
        // Predicated region
        $region17: #{tpu_custom_call.1} parent=11 // pred_check
          %p182 = pneg %p86
        $region18: #{tpu_custom_call.1} parent=11 // pred_check_branch
          %184 = sbr.rel (%p182) target = $region20
        $region19: #{tpu_custom_call.1} parent=11 // pred_region
          _
        $region20: #{tpu_custom_call.1} parent=11 // pred_fallthru
          _
        // Predicated region
        $region21: #{tpu_custom_call.1} parent=11 // pred_check
          %p185 = pneg %p107
        $region22: #{tpu_custom_call.1} parent=11 // pred_check_branch
          %187 = sbr.rel (%p185) target = $region24
        $region23: #{tpu_custom_call.1} parent=11 // pred_region
          %s189 = ssub.s32 4096, 4096
          %190 = vsyncadd [#allocation6], %s189
          %s191 = sshll.u32 [#allocation7], 4
          %s192 = int_to_ptr.vmem [resolvable:$true] %s191
          %197 = dma.hbm_to_vmem [thread:$0]  %s3, 4096, %s192, [#allocation6], 128, 128, 8
        $region24: #{tpu_custom_call.1} parent=11 // pred_fallthru
          _
        // Predicated region
        $region25: #{tpu_custom_call.1} parent=11 // pred_check
          %p198 = pneg %p128
        $region26: #{tpu_custom_call.1} parent=11 // pred_check_branch
          %200 = sbr.rel (%p198) target = $region28
        $region27: #{tpu_custom_call.1} parent=11 // pred_region
          _
        $region28: #{tpu_custom_call.1} parent=11 // pred_fallthru
          _
      $region12: #{tpu_custom_call.1} parent=5 // pred_fallthru
        _
      %p201 = scmp.lt.s32.totalorder %s18, 2
      // Predicated region
      $region29: #{tpu_custom_call.1} parent=5 // pred_check
        %p202 = pneg %p201
      $region30: #{tpu_custom_call.1} parent=5 // pred_check_branch
        %204 = sbr.rel (%p202) target = $region32
      $region31: #{tpu_custom_call.1} parent=5 // pred_region
        // Predicated region
        $region33: #{tpu_custom_call.1} parent=31 // pred_check
          %p205 = pneg %p38
        $region34: #{tpu_custom_call.1} parent=31 // pred_check_branch
          %207 = sbr.rel (%p205) target = $region36
        $region35: #{tpu_custom_call.1} parent=31 // pred_region
          %s208 = sand.u32 %s28, 1
          %s209 = scalar_lea.sflag [#allocation3], %s208
          %s210 = sand.u32 %s28, 1
          %s211 = smul.addr %s210, 1024
          %s212 = scalar_lea.vmem [#allocation2], %s211
          %s213 = smul.u32 32, %s18
          %s215 = ssub.s32 16384, 16384
          %216 = vsyncadd %s209, %s215
          %s217 = smul.addr %s213, 4
          %s218 = smul.addr %s217, 128
          %s219 = scalar_lea.hbm %s0, %s218
          %s220 = sshll.u32 %s212, 4
          %s221 = int_to_ptr.vmem [resolvable:$true] %s220
          %226 = dma.hbm_to_vmem [thread:$0]  %s219, 16384, %s221, %s209, 512, 512, 32
        $region36: #{tpu_custom_call.1} parent=31 // pred_fallthru
          _
      $region32: #{tpu_custom_call.1} parent=5 // pred_fallthru
        _
      %p227 = scmp.le.s32.totalorder 1, %s18
      %p228 = scmp.lt.s32.totalorder %s18, 3
      %p229 = pnand %p227, %p228
      %p230 = pneg %p229
      // Predicated region
      $region37: #{tpu_custom_call.1} parent=5 // pred_check
        _
      $region38: #{tpu_custom_call.1} parent=5 // pred_check_branch
        %232 = sbr.rel (%p229) target = $region40
      $region39: #{tpu_custom_call.1} parent=5 // pred_region
        %s233 = ssub.s32 %s18, 1
        %s234 = sand.u32 %s31, 1
        %s235 = scalar_lea.sflag [#allocation3], %s234
        %s236 = sand.u32 %s31, 1
        %s237 = smul.addr %s236, 1024
        %s238 = scalar_lea.vmem [#allocation2], %s237
        // Predicated region
        $region41: #{tpu_custom_call.1} parent=39 // pred_check
          %p239 = pneg %p44
        $region42: #{tpu_custom_call.1} parent=39 // pred_check_branch
          %241 = sbr.rel (%p239) target = $region44
        $region43: #{tpu_custom_call.1} parent=39 // pred_region
          %242 = dma.done %s235, 16384
        $region44: #{tpu_custom_call.1} parent=39 // pred_fallthru
          _
        // Predicated region
        $region45: #{tpu_custom_call.1} parent=39 // pred_check
          %p243 = pneg %p65
        $region46: #{tpu_custom_call.1} parent=39 // pred_check_branch
          %245 = sbr.rel (%p243) target = $region48
        $region47: #{tpu_custom_call.1} parent=39 // pred_region
          %246 = dma.done [#allocation6], 32768
        $region48: #{tpu_custom_call.1} parent=39 // pred_fallthru
          _
        // Predicated region
        $region49: #{tpu_custom_call.1} parent=39 // pred_check
          %p247 = pneg %p107
        $region50: #{tpu_custom_call.1} parent=39 // pred_check_branch
          %249 = sbr.rel (%p247) target = $region52
        $region51: #{tpu_custom_call.1} parent=39 // pred_region
          %250 = dma.done [#allocation6], 4096
        $region52: #{tpu_custom_call.1} parent=39 // pred_fallthru
          _
        %s251 = sand.u32 %s31, 1
        %s252 = scalar_lea.sflag [#allocation3], %s251
        %s253 = sand.u32 %s31, 1
        %s254 = smul.addr %s253, 1024
        %s255 = scalar_lea.vmem [#allocation2], %s254
        %p256 = pneg %p44
        %p257 = pneg %p41
        %p258 = pneg %p65
        %p259 = pneg %p62
        %p260 = pneg %p86
        %p261 = pneg %p83
        %p262 = pneg %p107
        %p263 = pneg %p104
        %p264 = pneg %p128
        %p265 = pneg %p125
        %p266 = pneg %p154
        %p267 = pneg %p151
        %s268 = sand.u32 %s141, 1
        %s269 = scalar_lea.sflag [#allocation4], %s268
        %s270 = sand.u32 %s141, 1
        %s271 = smul.addr %s270, 256
        %s272 = scalar_lea.vmem [#allocation8], %s271
        %s273 = smul.u32 32, %s23
        %s274 = smul.u32 32, %s23
        %v275 = vld [vmem:[%s238] sm:$0xff]
        %v276 = vld [vmem:[%s238 + $0x8] sm:$0xff]
        %v277 = vld [vmem:[%s238 + $0x10] sm:$0xff]
        %v278 = vld [vmem:[%s238 + $0x18] sm:$0xff]
        %v279 = vld [vmem:[%s238 + $0x20] sm:$0xff]
        %v280 = vld [vmem:[%s238 + $0x28] sm:$0xff]
        %v281 = vld [vmem:[%s238 + $0x30] sm:$0xff]
        %v282 = vld [vmem:[%s238 + $0x38] sm:$0xff]
        %v283 = vld [vmem:[%s238 + $0x40] sm:$0xff]
        %v284 = vld [vmem:[%s238 + $0x48] sm:$0xff]
        %v285 = vld [vmem:[%s238 + $0x50] sm:$0xff]
        %v286 = vld [vmem:[%s238 + $0x58] sm:$0xff]
        %v287 = vld [vmem:[%s238 + $0x60] sm:$0xff]
        %v288 = vld [vmem:[%s238 + $0x68] sm:$0xff]
        %v289 = vld [vmem:[%s238 + $0x70] sm:$0xff]
        %v290 = vld [vmem:[%s238 + $0x78] sm:$0xff]
        %v291 = vld [vmem:[%s238 + $0x80] sm:$0xff]
        %v292 = vld [vmem:[%s238 + $0x88] sm:$0xff]
        %v293 = vld [vmem:[%s238 + $0x90] sm:$0xff]
        %v294 = vld [vmem:[%s238 + $0x98] sm:$0xff]
        %v295 = vld [vmem:[%s238 + $0xa0] sm:$0xff]
        %v296 = vld [vmem:[%s238 + $0xa8] sm:$0xff]
        %v297 = vld [vmem:[%s238 + $0xb0] sm:$0xff]
        %v298 = vld [vmem:[%s238 + $0xb8] sm:$0xff]
        %v299 = vld [vmem:[%s238 + $0xc0] sm:$0xff]
        %v300 = vld [vmem:[%s238 + $0xc8] sm:$0xff]
        %v301 = vld [vmem:[%s238 + $0xd0] sm:$0xff]
        %v302 = vld [vmem:[%s238 + $0xd8] sm:$0xff]
        %v303 = vld [vmem:[%s238 + $0xe0] sm:$0xff]
        %v304 = vld [vmem:[%s238 + $0xe8] sm:$0xff]
        %v305 = vld [vmem:[%s238 + $0xf0] sm:$0xff]
        %v306 = vld [vmem:[%s238 + $0xf8] sm:$0xff]
        %v307 = vld [vmem:[%s238 + $0x100] sm:$0xff]
        %v308 = vld [vmem:[%s238 + $0x108] sm:$0xff]
        %v309 = vld [vmem:[%s238 + $0x110] sm:$0xff]
        %v310 = vld [vmem:[%s238 + $0x118] sm:$0xff]
        %v311 = vld [vmem:[%s238 + $0x120] sm:$0xff]
        %v312 = vld [vmem:[%s238 + $0x128] sm:$0xff]
        %v313 = vld [vmem:[%s238 + $0x130] sm:$0xff]
        %v314 = vld [vmem:[%s238 + $0x138] sm:$0xff]
        %v315 = vld [vmem:[%s238 + $0x140] sm:$0xff]
        %v316 = vld [vmem:[%s238 + $0x148] sm:$0xff]
        %v317 = vld [vmem:[%s238 + $0x150] sm:$0xff]
        %v318 = vld [vmem:[%s238 + $0x158] sm:$0xff]
        %v319 = vld [vmem:[%s238 + $0x160] sm:$0xff]
        %v320 = vld [vmem:[%s238 + $0x168] sm:$0xff]
        %v321 = vld [vmem:[%s238 + $0x170] sm:$0xff]
        %v322 = vld [vmem:[%s238 + $0x178] sm:$0xff]
        %v323 = vld [vmem:[%s238 + $0x180] sm:$0xff]
        %v324 = vld [vmem:[%s238 + $0x188] sm:$0xff]
        %v325 = vld [vmem:[%s238 + $0x190] sm:$0xff]
        %v326 = vld [vmem:[%s238 + $0x198] sm:$0xff]
        %v327 = vld [vmem:[%s238 + $0x1a0] sm:$0xff]
        %v328 = vld [vmem:[%s238 + $0x1a8] sm:$0xff]
        %v329 = vld [vmem:[%s238 + $0x1b0] sm:$0xff]
        %v330 = vld [vmem:[%s238 + $0x1b8] sm:$0xff]
        %v331 = vld [vmem:[%s238 + $0x1c0] sm:$0xff]
        %v332 = vld [vmem:[%s238 + $0x1c8] sm:$0xff]
        %v333 = vld [vmem:[%s238 + $0x1d0] sm:$0xff]
        %v334 = vld [vmem:[%s238 + $0x1d8] sm:$0xff]
        %v335 = vld [vmem:[%s238 + $0x1e0] sm:$0xff]
        %v336 = vld [vmem:[%s238 + $0x1e8] sm:$0xff]
        %v337 = vld [vmem:[%s238 + $0x1f0] sm:$0xff]
        %v338 = vld [vmem:[%s238 + $0x1f8] sm:$0xff]
        %v339 = vld [vmem:[%s238 + $0x200] sm:$0xff]
        %v340 = vld [vmem:[%s238 + $0x208] sm:$0xff]
        %v341 = vld [vmem:[%s238 + $0x210] sm:$0xff]
        %v342 = vld [vmem:[%s238 + $0x218] sm:$0xff]
        %v343 = vld [vmem:[%s238 + $0x220] sm:$0xff]
        %v344 = vld [vmem:[%s238 + $0x228] sm:$0xff]
        %v345 = vld [vmem:[%s238 + $0x230] sm:$0xff]
        %v346 = vld [vmem:[%s238 + $0x238] sm:$0xff]
        %v347 = vld [vmem:[%s238 + $0x240] sm:$0xff]
        %v348 = vld [vmem:[%s238 + $0x248] sm:$0xff]
        %v349 = vld [vmem:[%s238 + $0x250] sm:$0xff]
        %v350 = vld [vmem:[%s238 + $0x258] sm:$0xff]
        %v351 = vld [vmem:[%s238 + $0x260] sm:$0xff]
        %v352 = vld [vmem:[%s238 + $0x268] sm:$0xff]
        %v353 = vld [vmem:[%s238 + $0x270] sm:$0xff]
        %v354 = vld [vmem:[%s238 + $0x278] sm:$0xff]
        %v355 = vld [vmem:[%s238 + $0x280] sm:$0xff]
        %v356 = vld [vmem:[%s238 + $0x288] sm:$0xff]
        %v357 = vld [vmem:[%s238 + $0x290] sm:$0xff]
        %v358 = vld [vmem:[%s238 + $0x298] sm:$0xff]
        %v359 = vld [vmem:[%s238 + $0x2a0] sm:$0xff]
        %v360 = vld [vmem:[%s238 + $0x2a8] sm:$0xff]
        %v361 = vld [vmem:[%s238 + $0x2b0] sm:$0xff]
        %v362 = vld [vmem:[%s238 + $0x2b8] sm:$0xff]
        %v363 = vld [vmem:[%s238 + $0x2c0] sm:$0xff]
        %v364 = vld [vmem:[%s238 + $0x2c8] sm:$0xff]
        %v365 = vld [vmem:[%s238 + $0x2d0] sm:$0xff]
        %v366 = vld [vmem:[%s238 + $0x2d8] sm:$0xff]
        %v367 = vld [vmem:[%s238 + $0x2e0] sm:$0xff]
        %v368 = vld [vmem:[%s238 + $0x2e8] sm:$0xff]
        %v369 = vld [vmem:[%s238 + $0x2f0] sm:$0xff]
        %v370 = vld [vmem:[%s238 + $0x2f8] sm:$0xff]
        %v371 = vld [vmem:[%s238 + $0x300] sm:$0xff]
        %v372 = vld [vmem:[%s238 + $0x308] sm:$0xff]
        %v373 = vld [vmem:[%s238 + $0x310] sm:$0xff]
        %v374 = vld [vmem:[%s238 + $0x318] sm:$0xff]
        %v375 = vld [vmem:[%s238 + $0x320] sm:$0xff]
        %v376 = vld [vmem:[%s238 + $0x328] sm:$0xff]
        %v377 = vld [vmem:[%s238 + $0x330] sm:$0xff]
        %v378 = vld [vmem:[%s238 + $0x338] sm:$0xff]
        %v379 = vld [vmem:[%s238 + $0x340] sm:$0xff]
        %v380 = vld [vmem:[%s238 + $0x348] sm:$0xff]
        %v381 = vld [vmem:[%s238 + $0x350] sm:$0xff]
        %v382 = vld [vmem:[%s238 + $0x358] sm:$0xff]
        %v383 = vld [vmem:[%s238 + $0x360] sm:$0xff]
        %v384 = vld [vmem:[%s238 + $0x368] sm:$0xff]
        %v385 = vld [vmem:[%s238 + $0x370] sm:$0xff]
        %v386 = vld [vmem:[%s238 + $0x378] sm:$0xff]
        %v387 = vld [vmem:[%s238 + $0x380] sm:$0xff]
        %v388 = vld [vmem:[%s238 + $0x388] sm:$0xff]
        %v389 = vld [vmem:[%s238 + $0x390] sm:$0xff]
        %v390 = vld [vmem:[%s238 + $0x398] sm:$0xff]
        %v391 = vld [vmem:[%s238 + $0x3a0] sm:$0xff]
        %v392 = vld [vmem:[%s238 + $0x3a8] sm:$0xff]
        %v393 = vld [vmem:[%s238 + $0x3b0] sm:$0xff]
        %v394 = vld [vmem:[%s238 + $0x3b8] sm:$0xff]
        %v395 = vld [vmem:[%s238 + $0x3c0] sm:$0xff]
        %v396 = vld [vmem:[%s238 + $0x3c8] sm:$0xff]
        %v397 = vld [vmem:[%s238 + $0x3d0] sm:$0xff]
        %v398 = vld [vmem:[%s238 + $0x3d8] sm:$0xff]
        %v399 = vld [vmem:[%s238 + $0x3e0] sm:$0xff]
        %v400 = vld [vmem:[%s238 + $0x3e8] sm:$0xff]
        %v401 = vld [vmem:[%s238 + $0x3f0] sm:$0xff]
        %v402 = vld [vmem:[%s238 + $0x3f8] sm:$0xff]
        %v403 = vld [vmem:[#allocation5] sm:$0xff]
        %v404 = vld [vmem:[#allocation5 + $0x8] sm:$0xff]
        %v405 = vld [vmem:[#allocation5 + $0x10] sm:$0xff]
        %v406 = vld [vmem:[#allocation5 + $0x18] sm:$0xff]
        %v407 = vld [vmem:[#allocation5 + $0x20] sm:$0xff]
        %v408 = vld [vmem:[#allocation5 + $0x28] sm:$0xff]
        %v409 = vld [vmem:[#allocation5 + $0x30] sm:$0xff]
        %v410 = vld [vmem:[#allocation5 + $0x38] sm:$0xff]
        %v411 = vld [vmem:[#allocation5 + $0x40] sm:$0xff]
        %v412 = vld [vmem:[#allocation5 + $0x48] sm:$0xff]
        %v413 = vld [vmem:[#allocation5 + $0x50] sm:$0xff]
        %v414 = vld [vmem:[#allocation5 + $0x58] sm:$0xff]
        %v415 = vld [vmem:[#allocation5 + $0x60] sm:$0xff]
        %v416 = vld [vmem:[#allocation5 + $0x68] sm:$0xff]
        %v417 = vld [vmem:[#allocation5 + $0x70] sm:$0xff]
        %v418 = vld [vmem:[#allocation5 + $0x78] sm:$0xff]
        %v419 = vld [vmem:[#allocation5 + $0x80] sm:$0xff]
        %v420 = vld [vmem:[#allocation5 + $0x88] sm:$0xff]
        %v421 = vld [vmem:[#allocation5 + $0x90] sm:$0xff]
        %v422 = vld [vmem:[#allocation5 + $0x98] sm:$0xff]
        %v423 = vld [vmem:[#allocation5 + $0xa0] sm:$0xff]
        %v424 = vld [vmem:[#allocation5 + $0xa8] sm:$0xff]
        %v425 = vld [vmem:[#allocation5 + $0xb0] sm:$0xff]
        %v426 = vld [vmem:[#allocation5 + $0xb8] sm:$0xff]
        %v427 = vld [vmem:[#allocation5 + $0xc0] sm:$0xff]
        %v428 = vld [vmem:[#allocation5 + $0xc8] sm:$0xff]
        %v429 = vld [vmem:[#allocation5 + $0xd0] sm:$0xff]
        %v430 = vld [vmem:[#allocation5 + $0xd8] sm:$0xff]
        %v431 = vld [vmem:[#allocation5 + $0xe0] sm:$0xff]
        %v432 = vld [vmem:[#allocation5 + $0xe8] sm:$0xff]
        %v433 = vld [vmem:[#allocation5 + $0xf0] sm:$0xff]
        %v434 = vld [vmem:[#allocation5 + $0xf8] sm:$0xff]
        %v435 = vld [vmem:[#allocation5 + $0x100] sm:$0xff]
        %v436 = vld [vmem:[#allocation5 + $0x108] sm:$0xff]
        %v437 = vld [vmem:[#allocation5 + $0x110] sm:$0xff]
        %v438 = vld [vmem:[#allocation5 + $0x118] sm:$0xff]
        %v439 = vld [vmem:[#allocation5 + $0x120] sm:$0xff]
        %v440 = vld [vmem:[#allocation5 + $0x128] sm:$0xff]
        %v441 = vld [vmem:[#allocation5 + $0x130] sm:$0xff]
        %v442 = vld [vmem:[#allocation5 + $0x138] sm:$0xff]
        %v443 = vld [vmem:[#allocation5 + $0x140] sm:$0xff]
        %v444 = vld [vmem:[#allocation5 + $0x148] sm:$0xff]
        %v445 = vld [vmem:[#allocation5 + $0x150] sm:$0xff]
        %v446 = vld [vmem:[#allocation5 + $0x158] sm:$0xff]
        %v447 = vld [vmem:[#allocation5 + $0x160] sm:$0xff]
        %v448 = vld [vmem:[#allocation5 + $0x168] sm:$0xff]
        %v449 = vld [vmem:[#allocation5 + $0x170] sm:$0xff]
        %v450 = vld [vmem:[#allocation5 + $0x178] sm:$0xff]
        %v451 = vld [vmem:[#allocation5 + $0x180] sm:$0xff]
        %v452 = vld [vmem:[#allocation5 + $0x188] sm:$0xff]
        %v453 = vld [vmem:[#allocation5 + $0x190] sm:$0xff]
        %v454 = vld [vmem:[#allocation5 + $0x198] sm:$0xff]
        %v455 = vld [vmem:[#allocation5 + $0x1a0] sm:$0xff]
        %v456 = vld [vmem:[#allocation5 + $0x1a8] sm:$0xff]
        %v457 = vld [vmem:[#allocation5 + $0x1b0] sm:$0xff]
        %v458 = vld [vmem:[#allocation5 + $0x1b8] sm:$0xff]
        %v459 = vld [vmem:[#allocation5 + $0x1c0] sm:$0xff]
        %v460 = vld [vmem:[#allocation5 + $0x1c8] sm:$0xff]
        %v461 = vld [vmem:[#allocation5 + $0x1d0] sm:$0xff]
        %v462 = vld [vmem:[#allocation5 + $0x1d8] sm:$0xff]
        %v463 = vld [vmem:[#allocation5 + $0x1e0] sm:$0xff]
        %v464 = vld [vmem:[#allocation5 + $0x1e8] sm:$0xff]
        %v465 = vld [vmem:[#allocation5 + $0x1f0] sm:$0xff]
        %v466 = vld [vmem:[#allocation5 + $0x1f8] sm:$0xff]
        %v467 = vld [vmem:[#allocation5 + $0x200] sm:$0xff]
        %v468 = vld [vmem:[#allocation5 + $0x208] sm:$0xff]
        %v469 = vld [vmem:[#allocation5 + $0x210] sm:$0xff]
        %v470 = vld [vmem:[#allocation5 + $0x218] sm:$0xff]
        %v471 = vld [vmem:[#allocation5 + $0x220] sm:$0xff]
        %v472 = vld [vmem:[#allocation5 + $0x228] sm:$0xff]
        %v473 = vld [vmem:[#allocation5 + $0x230] sm:$0xff]
        %v474 = vld [vmem:[#allocation5 + $0x238] sm:$0xff]
        %v475 = vld [vmem:[#allocation5 + $0x240] sm:$0xff]
        %v476 = vld [vmem:[#allocation5 + $0x248] sm:$0xff]
        %v477 = vld [vmem:[#allocation5 + $0x250] sm:$0xff]
        %v478 = vld [vmem:[#allocation5 + $0x258] sm:$0xff]
        %v479 = vld [vmem:[#allocation5 + $0x260] sm:$0xff]
        %v480 = vld [vmem:[#allocation5 + $0x268] sm:$0xff]
        %v481 = vld [vmem:[#allocation5 + $0x270] sm:$0xff]
        %v482 = vld [vmem:[#allocation5 + $0x278] sm:$0xff]
        %v483 = vld [vmem:[#allocation5 + $0x280] sm:$0xff]
        %v484 = vld [vmem:[#allocation5 + $0x288] sm:$0xff]
        %v485 = vld [vmem:[#allocation5 + $0x290] sm:$0xff]
        %v486 = vld [vmem:[#allocation5 + $0x298] sm:$0xff]
        %v487 = vld [vmem:[#allocation5 + $0x2a0] sm:$0xff]
        %v488 = vld [vmem:[#allocation5 + $0x2a8] sm:$0xff]
        %v489 = vld [vmem:[#allocation5 + $0x2b0] sm:$0xff]
        %v490 = vld [vmem:[#allocation5 + $0x2b8] sm:$0xff]
        %v491 = vld [vmem:[#allocation5 + $0x2c0] sm:$0xff]
        %v492 = vld [vmem:[#allocation5 + $0x2c8] sm:$0xff]
        %v493 = vld [vmem:[#allocation5 + $0x2d0] sm:$0xff]
        %v494 = vld [vmem:[#allocation5 + $0x2d8] sm:$0xff]
        %v495 = vld [vmem:[#allocation5 + $0x2e0] sm:$0xff]
        %v496 = vld [vmem:[#allocation5 + $0x2e8] sm:$0xff]
        %v497 = vld [vmem:[#allocation5 + $0x2f0] sm:$0xff]
        %v498 = vld [vmem:[#allocation5 + $0x2f8] sm:$0xff]
        %v499 = vld [vmem:[#allocation5 + $0x300] sm:$0xff]
        %v500 = vld [vmem:[#allocation5 + $0x308] sm:$0xff]
        %v501 = vld [vmem:[#allocation5 + $0x310] sm:$0xff]
        %v502 = vld [vmem:[#allocation5 + $0x318] sm:$0xff]
        %v503 = vld [vmem:[#allocation5 + $0x320] sm:$0xff]
        %v504 = vld [vmem:[#allocation5 + $0x328] sm:$0xff]
        %v505 = vld [vmem:[#allocation5 + $0x330] sm:$0xff]
        %v506 = vld [vmem:[#allocation5 + $0x338] sm:$0xff]
        %v507 = vld [vmem:[#allocation5 + $0x340] sm:$0xff]
        %v508 = vld [vmem:[#allocation5 + $0x348] sm:$0xff]
        %v509 = vld [vmem:[#allocation5 + $0x350] sm:$0xff]
        %v510 = vld [vmem:[#allocation5 + $0x358] sm:$0xff]
        %v511 = vld [vmem:[#allocation5 + $0x360] sm:$0xff]
        %v512 = vld [vmem:[#allocation5 + $0x368] sm:$0xff]
        %v513 = vld [vmem:[#allocation5 + $0x370] sm:$0xff]
        %v514 = vld [vmem:[#allocation5 + $0x378] sm:$0xff]
        %v515 = vld [vmem:[#allocation5 + $0x380] sm:$0xff]
        %v516 = vld [vmem:[#allocation5 + $0x388] sm:$0xff]
        %v517 = vld [vmem:[#allocation5 + $0x390] sm:$0xff]
        %v518 = vld [vmem:[#allocation5 + $0x398] sm:$0xff]
        %v519 = vld [vmem:[#allocation5 + $0x3a0] sm:$0xff]
        %v520 = vld [vmem:[#allocation5 + $0x3a8] sm:$0xff]
        %v521 = vld [vmem:[#allocation5 + $0x3b0] sm:$0xff]
        %v522 = vld [vmem:[#allocation5 + $0x3b8] sm:$0xff]
        %v523 = vld [vmem:[#allocation5 + $0x3c0] sm:$0xff]
        %v524 = vld [vmem:[#allocation5 + $0x3c8] sm:$0xff]
        %v525 = vld [vmem:[#allocation5 + $0x3d0] sm:$0xff]
        %v526 = vld [vmem:[#allocation5 + $0x3d8] sm:$0xff]
        %v527 = vld [vmem:[#allocation5 + $0x3e0] sm:$0xff]
        %v528 = vld [vmem:[#allocation5 + $0x3e8] sm:$0xff]
        %v529 = vld [vmem:[#allocation5 + $0x3f0] sm:$0xff]
        %v530 = vld [vmem:[#allocation5 + $0x3f8] sm:$0xff]
        %v531 = vld [vmem:[#allocation5 + $0x400] sm:$0xff]
        %v532 = vld [vmem:[#allocation5 + $0x408] sm:$0xff]
        %v533 = vld [vmem:[#allocation5 + $0x410] sm:$0xff]
        %v534 = vld [vmem:[#allocation5 + $0x418] sm:$0xff]
        %v535 = vld [vmem:[#allocation5 + $0x420] sm:$0xff]
        %v536 = vld [vmem:[#allocation5 + $0x428] sm:$0xff]
        %v537 = vld [vmem:[#allocation5 + $0x430] sm:$0xff]
        %v538 = vld [vmem:[#allocation5 + $0x438] sm:$0xff]
        %v539 = vld [vmem:[#allocation5 + $0x440] sm:$0xff]
        %v540 = vld [vmem:[#allocation5 + $0x448] sm:$0xff]
        %v541 = vld [vmem:[#allocation5 + $0x450] sm:$0xff]
        %v542 = vld [vmem:[#allocation5 + $0x458] sm:$0xff]
        %v543 = vld [vmem:[#allocation5 + $0x460] sm:$0xff]
        %v544 = vld [vmem:[#allocation5 + $0x468] sm:$0xff]
        %v545 = vld [vmem:[#allocation5 + $0x470] sm:$0xff]
        %v546 = vld [vmem:[#allocation5 + $0x478] sm:$0xff]
        %v547 = vld [vmem:[#allocation5 + $0x480] sm:$0xff]
        %v548 = vld [vmem:[#allocation5 + $0x488] sm:$0xff]
        %v549 = vld [vmem:[#allocation5 + $0x490] sm:$0xff]
        %v550 = vld [vmem:[#allocation5 + $0x498] sm:$0xff]
        %v551 = vld [vmem:[#allocation5 + $0x4a0] sm:$0xff]
        %v552 = vld [vmem:[#allocation5 + $0x4a8] sm:$0xff]
        %v553 = vld [vmem:[#allocation5 + $0x4b0] sm:$0xff]
        %v554 = vld [vmem:[#allocation5 + $0x4b8] sm:$0xff]
        %v555 = vld [vmem:[#allocation5 + $0x4c0] sm:$0xff]
        %v556 = vld [vmem:[#allocation5 + $0x4c8] sm:$0xff]
        %v557 = vld [vmem:[#allocation5 + $0x4d0] sm:$0xff]
        %v558 = vld [vmem:[#allocation5 + $0x4d8] sm:$0xff]
        %v559 = vld [vmem:[#allocation5 + $0x4e0] sm:$0xff]
        %v560 = vld [vmem:[#allocation5 + $0x4e8] sm:$0xff]
        %v561 = vld [vmem:[#allocation5 + $0x4f0] sm:$0xff]
        %v562 = vld [vmem:[#allocation5 + $0x4f8] sm:$0xff]
        %v563 = vld [vmem:[#allocation5 + $0x500] sm:$0xff]
        %v564 = vld [vmem:[#allocation5 + $0x508] sm:$0xff]
        %v565 = vld [vmem:[#allocation5 + $0x510] sm:$0xff]
        %v566 = vld [vmem:[#allocation5 + $0x518] sm:$0xff]
        %v567 = vld [vmem:[#allocation5 + $0x520] sm:$0xff]
        %v568 = vld [vmem:[#allocation5 + $0x528] sm:$0xff]
        %v569 = vld [vmem:[#allocation5 + $0x530] sm:$0xff]
        %v570 = vld [vmem:[#allocation5 + $0x538] sm:$0xff]
        %v571 = vld [vmem:[#allocation5 + $0x540] sm:$0xff]
        %v572 = vld [vmem:[#allocation5 + $0x548] sm:$0xff]
        %v573 = vld [vmem:[#allocation5 + $0x550] sm:$0xff]
        %v574 = vld [vmem:[#allocation5 + $0x558] sm:$0xff]
        %v575 = vld [vmem:[#allocation5 + $0x560] sm:$0xff]
        %v576 = vld [vmem:[#allocation5 + $0x568] sm:$0xff]
        %v577 = vld [vmem:[#allocation5 + $0x570] sm:$0xff]
        %v578 = vld [vmem:[#allocation5 + $0x578] sm:$0xff]
        %v579 = vld [vmem:[#allocation5 + $0x580] sm:$0xff]
        %v580 = vld [vmem:[#allocation5 + $0x588] sm:$0xff]
        %v581 = vld [vmem:[#allocation5 + $0x590] sm:$0xff]
        %v582 = vld [vmem:[#allocation5 + $0x598] sm:$0xff]
        %v583 = vld [vmem:[#allocation5 + $0x5a0] sm:$0xff]
        %v584 = vld [vmem:[#allocation5 + $0x5a8] sm:$0xff]
        %v585 = vld [vmem:[#allocation5 + $0x5b0] sm:$0xff]
        %v586 = vld [vmem:[#allocation5 + $0x5b8] sm:$0xff]
        %v587 = vld [vmem:[#allocation5 + $0x5c0] sm:$0xff]
        %v588 = vld [vmem:[#allocation5 + $0x5c8] sm:$0xff]
        %v589 = vld [vmem:[#allocation5 + $0x5d0] sm:$0xff]
        %v590 = vld [vmem:[#allocation5 + $0x5d8] sm:$0xff]
        %v591 = vld [vmem:[#allocation5 + $0x5e0] sm:$0xff]
        %v592 = vld [vmem:[#allocation5 + $0x5e8] sm:$0xff]
        %v593 = vld [vmem:[#allocation5 + $0x5f0] sm:$0xff]
        %v594 = vld [vmem:[#allocation5 + $0x5f8] sm:$0xff]
        %v595 = vld [vmem:[#allocation5 + $0x600] sm:$0xff]
        %v596 = vld [vmem:[#allocation5 + $0x608] sm:$0xff]
        %v597 = vld [vmem:[#allocation5 + $0x610] sm:$0xff]
        %v598 = vld [vmem:[#allocation5 + $0x618] sm:$0xff]
        %v599 = vld [vmem:[#allocation5 + $0x620] sm:$0xff]
        %v600 = vld [vmem:[#allocation5 + $0x628] sm:$0xff]
        %v601 = vld [vmem:[#allocation5 + $0x630] sm:$0xff]
        %v602 = vld [vmem:[#allocation5 + $0x638] sm:$0xff]
        %v603 = vld [vmem:[#allocation5 + $0x640] sm:$0xff]
        %v604 = vld [vmem:[#allocation5 + $0x648] sm:$0xff]
        %v605 = vld [vmem:[#allocation5 + $0x650] sm:$0xff]
        %v606 = vld [vmem:[#allocation5 + $0x658] sm:$0xff]
        %v607 = vld [vmem:[#allocation5 + $0x660] sm:$0xff]
        %v608 = vld [vmem:[#allocation5 + $0x668] sm:$0xff]
        %v609 = vld [vmem:[#allocation5 + $0x670] sm:$0xff]
        %v610 = vld [vmem:[#allocation5 + $0x678] sm:$0xff]
        %v611 = vld [vmem:[#allocation5 + $0x680] sm:$0xff]
        %v612 = vld [vmem:[#allocation5 + $0x688] sm:$0xff]
        %v613 = vld [vmem:[#allocation5 + $0x690] sm:$0xff]
        %v614 = vld [vmem:[#allocation5 + $0x698] sm:$0xff]
        %v615 = vld [vmem:[#allocation5 + $0x6a0] sm:$0xff]
        %v616 = vld [vmem:[#allocation5 + $0x6a8] sm:$0xff]
        %v617 = vld [vmem:[#allocation5 + $0x6b0] sm:$0xff]
        %v618 = vld [vmem:[#allocation5 + $0x6b8] sm:$0xff]
        %v619 = vld [vmem:[#allocation5 + $0x6c0] sm:$0xff]
        %v620 = vld [vmem:[#allocation5 + $0x6c8] sm:$0xff]
        %v621 = vld [vmem:[#allocation5 + $0x6d0] sm:$0xff]
        %v622 = vld [vmem:[#allocation5 + $0x6d8] sm:$0xff]
        %v623 = vld [vmem:[#allocation5 + $0x6e0] sm:$0xff]
        %v624 = vld [vmem:[#allocation5 + $0x6e8] sm:$0xff]
        %v625 = vld [vmem:[#allocation5 + $0x6f0] sm:$0xff]
        %v626 = vld [vmem:[#allocation5 + $0x6f8] sm:$0xff]
        %v627 = vld [vmem:[#allocation5 + $0x700] sm:$0xff]
        %v628 = vld [vmem:[#allocation5 + $0x708] sm:$0xff]
        %v629 = vld [vmem:[#allocation5 + $0x710] sm:$0xff]
        %v630 = vld [vmem:[#allocation5 + $0x718] sm:$0xff]
        %v631 = vld [vmem:[#allocation5 + $0x720] sm:$0xff]
        %v632 = vld [vmem:[#allocation5 + $0x728] sm:$0xff]
        %v633 = vld [vmem:[#allocation5 + $0x730] sm:$0xff]
        %v634 = vld [vmem:[#allocation5 + $0x738] sm:$0xff]
        %v635 = vld [vmem:[#allocation5 + $0x740] sm:$0xff]
        %v636 = vld [vmem:[#allocation5 + $0x748] sm:$0xff]
        %v637 = vld [vmem:[#allocation5 + $0x750] sm:$0xff]
        %v638 = vld [vmem:[#allocation5 + $0x758] sm:$0xff]
        %v639 = vld [vmem:[#allocation5 + $0x760] sm:$0xff]
        %v640 = vld [vmem:[#allocation5 + $0x768] sm:$0xff]
        %v641 = vld [vmem:[#allocation5 + $0x770] sm:$0xff]
        %v642 = vld [vmem:[#allocation5 + $0x778] sm:$0xff]
        %v643 = vld [vmem:[#allocation5 + $0x780] sm:$0xff]
        %v644 = vld [vmem:[#allocation5 + $0x788] sm:$0xff]
        %v645 = vld [vmem:[#allocation5 + $0x790] sm:$0xff]
        %v646 = vld [vmem:[#allocation5 + $0x798] sm:$0xff]
        %v647 = vld [vmem:[#allocation5 + $0x7a0] sm:$0xff]
        %v648 = vld [vmem:[#allocation5 + $0x7a8] sm:$0xff]
        %v649 = vld [vmem:[#allocation5 + $0x7b0] sm:$0xff]
        %v650 = vld [vmem:[#allocation5 + $0x7b8] sm:$0xff]
        %v651 = vld [vmem:[#allocation5 + $0x7c0] sm:$0xff]
        %v652 = vld [vmem:[#allocation5 + $0x7c8] sm:$0xff]
        %v653 = vld [vmem:[#allocation5 + $0x7d0] sm:$0xff]
        %v654 = vld [vmem:[#allocation5 + $0x7d8] sm:$0xff]
        %v655 = vld [vmem:[#allocation5 + $0x7e0] sm:$0xff]
        %v656 = vld [vmem:[#allocation5 + $0x7e8] sm:$0xff]
        %v657 = vld [vmem:[#allocation5 + $0x7f0] sm:$0xff]
        %v658 = vld [vmem:[#allocation5 + $0x7f8] sm:$0xff]
        %v659 = vld [vmem:[%s2] sm:$0xf]
        %v661 = vlaneseq
        %v662 = vshrl.u32 %v661, 7
        %v663 = vsub.s32 0, %v662
        %v664 = vrot.slane %v659, %v663
        %v665 = vlaneseq
        %v666 = vshrl.u32 %v665, 7
        %v667 = vsub.s32 1, %v666
        %v668 = vrot.slane %v659, %v667
        %v669 = vlaneseq
        %v670 = vshrl.u32 %v669, 7
        %v671 = vsub.s32 2, %v670
        %v672 = vrot.slane %v659, %v671
        %v673 = vlaneseq
        %v674 = vshrl.u32 %v673, 7
        %v675 = vsub.s32 3, %v674
        %v676 = vrot.slane %v659, %v675
        %681 = vmatprep.subr.mxu0 %v404
        %682 = vmatpush1.msra.mxu0 %v403
        %683 = vmatprep.subr.mxu0 %v408
        %684 = vmatpush1.msra.mxu0 %v407
        %685 = vmatprep.subr.mxu0 %v412
        %686 = vmatpush1.msra.mxu0 %v411
        %687 = vmatprep.subr.mxu0 %v416
        %688 = vmatpush1.msra.mxu0 %v415
        %689 = vmatprep.subr.mxu0 %v420
        %690 = vmatpush1.msra.mxu0 %v419
        %691 = vmatprep.subr.mxu0 %v424
        %692 = vmatpush1.msra.mxu0 %v423
        %693 = vmatprep.subr.mxu0 %v428
        %694 = vmatpush1.msra.mxu0 %v427
        %695 = vmatprep.subr.mxu0 %v432
        %696 = vmatpush1.msra.mxu0 %v431
        %697 = vmatprep.subr.mxu0 %v436
        %698 = vmatpush1.msra.mxu0 %v435
        %699 = vmatprep.subr.mxu0 %v440
        %700 = vmatpush1.msra.mxu0 %v439
        %701 = vmatprep.subr.mxu0 %v444
        %702 = vmatpush1.msra.mxu0 %v443
        %703 = vmatprep.subr.mxu0 %v448
        %704 = vmatpush1.msra.mxu0 %v447
        %705 = vmatprep.subr.mxu0 %v452
        %706 = vmatpush1.msra.mxu0 %v451
        %707 = vmatprep.subr.mxu0 %v456
        %708 = vmatpush1.msra.mxu0 %v455
        %709 = vmatprep.subr.mxu0 %v460
        %710 = vmatpush1.msra.mxu0 %v459
        %711 = vmatprep.subr.mxu0 %v464
        %712 = vmatpush1.msra.mxu0 %v463
        %713 = vmatprep.subr.mxu0 %v468
        %714 = vmatpush1.msra.mxu0 %v467
        %715 = vmatprep.subr.mxu0 %v472
        %716 = vmatpush1.msra.mxu0 %v471
        %717 = vmatprep.subr.mxu0 %v476
        %718 = vmatpush1.msra.mxu0 %v475
        %719 = vmatprep.subr.mxu0 %v480
        %720 = vmatpush1.msra.mxu0 %v479
        %721 = vmatprep.subr.mxu0 %v484
        %722 = vmatpush1.msra.mxu0 %v483
        %723 = vmatprep.subr.mxu0 %v488
        %724 = vmatpush1.msra.mxu0 %v487
        %725 = vmatprep.subr.mxu0 %v492
        %726 = vmatpush1.msra.mxu0 %v491
        %727 = vmatprep.subr.mxu0 %v496
        %728 = vmatpush1.msra.mxu0 %v495
        %729 = vmatprep.subr.mxu0 %v500
        %730 = vmatpush1.msra.mxu0 %v499
        %731 = vmatprep.subr.mxu0 %v504
        %732 = vmatpush1.msra.mxu0 %v503
        %733 = vmatprep.subr.mxu0 %v508
        %734 = vmatpush1.msra.mxu0 %v507
        %735 = vmatprep.subr.mxu0 %v512
        %736 = vmatpush1.msra.mxu0 %v511
        %737 = vmatprep.subr.mxu0 %v516
        %738 = vmatpush1.msra.mxu0 %v515
        %739 = vmatprep.subr.mxu0 %v520
        %740 = vmatpush1.msra.mxu0 %v519
        %741 = vmatprep.subr.mxu0 %v524
        %742 = vmatpush1.msra.mxu0 %v523
        %743 = vmatprep.subr.mxu0 %v528
        %744 = vmatpush1.msra.mxu0 %v527
        %745 = vmatprep.mubr.f32.mxu0 %v276
        %746 = vmatmul.mubr.f32.gmra.mrb[0].mxu0 %v275
        %v747 = vpop.f32.mrb[0].mxu0
        %v748 = vadd.f32 %v664, %v747
        %v749 = vpop.f32.mrb[0].mxu0
        %v750 = vadd.f32 %v668, %v749
        %751 = vmatprep.mubr.f32.mxu0 %v280
        %752 = vmatmul.mubr.f32.gmra.mrb[0].mxu0 %v279
        %v753 = vpop.f32.mrb[0].mxu0
        %v754 = vadd.f32 %v664, %v753
        %v755 = vpop.f32.mrb[0].mxu0
        %v756 = vadd.f32 %v668, %v755
        %757 = vmatprep.mubr.f32.mxu0 %v284
        %758 = vmatmul.mubr.f32.gmra.mrb[0].mxu0 %v283
        %v759 = vpop.f32.mrb[0].mxu0
        %v760 = vadd.f32 %v664, %v759
        %v761 = vpop.f32.mrb[0].mxu0
        %v762 = vadd.f32 %v668, %v761
        %763 = vmatprep.mubr.f32.mxu0 %v288
        %764 = vmatmul.mubr.f32.gmra.mrb[0].mxu0 %v287
        %v765 = vpop.f32.mrb[0].mxu0
        %v766 = vadd.f32 %v664, %v765
        %v767 = vpop.f32.mrb[0].mxu0
        %v768 = vadd.f32 %v668, %v767
        %769 = vmatprep.mubr.f32.mxu0 %v292
        %770 = vmatmul.mubr.f32.gmra.mrb[0].mxu0 %v291
        %v771 = vpop.f32.mrb[0].mxu0
        %v772 = vadd.f32 %v664, %v771
        %v773 = vpop.f32.mrb[0].mxu0
        %v774 = vadd.f32 %v668, %v773
        %775 = vmatprep.mubr.f32.mxu0 %v296
        %776 = vmatmul.mubr.f32.gmra.mrb[0].mxu0 %v295
        %v777 = vpop.f32.mrb[0].mxu0
        %v778 = vadd.f32 %v664, %v777
        %v779 = vpop.f32.mrb[0].mxu0
        %v780 = vadd.f32 %v668, %v779
        %781 = vmatprep.mubr.f32.mxu0 %v300
        %782 = vmatmul.mubr.f32.gmra.mrb[0].mxu0 %v299
        %v783 = vpop.f32.mrb[0].mxu0
        %v784 = vadd.f32 %v664, %v783
        %v785 = vpop.f32.mrb[0].mxu0
        %v786 = vadd.f32 %v668, %v785
        %787 = vmatprep.mubr.f32.mxu0 %v304
        %788 = vmatmul.mubr.f32.gmra.mrb[0].mxu0 %v303
        %v789 = vpop.f32.mrb[0].mxu0
        %v790 = vadd.f32 %v664, %v789
        %v791 = vpop.f32.mrb[0].mxu0
        %v792 = vadd.f32 %v668, %v791
        %793 = vmatprep.mubr.f32.mxu0 %v308
        %794 = vmatmul.mubr.f32.gmra.mrb[0].mxu0 %v307
        %v795 = vpop.f32.mrb[0].mxu0
        %v796 = vadd.f32 %v664, %v795
        %v797 = vpop.f32.mrb[0].mxu0
        %v798 = vadd.f32 %v668, %v797
        %799 = vmatprep.mubr.f32.mxu0 %v312
        %800 = vmatmul.mubr.f32.gmra.mrb[0].mxu0 %v311
        %v801 = vpop.f32.mrb[0].mxu0
        %v802 = vadd.f32 %v664, %v801
        %v803 = vpop.f32.mrb[0].mxu0
        %v804 = vadd.f32 %v668, %v803
        %805 = vmatprep.mubr.f32.mxu0 %v316
        %806 = vmatmul.mubr.f32.gmra.mrb[0].mxu0 %v315
        %v807 = vpop.f32.mrb[0].mxu0
        %v808 = vadd.f32 %v664, %v807
        %v809 = vpop.f32.mrb[0].mxu0
        %v810 = vadd.f32 %v668, %v809
        %811 = vmatprep.mubr.f32.mxu0 %v320
        %812 = vmatmul.mubr.f32.gmra.mrb[0].mxu0 %v319
        %v813 = vpop.f32.mrb[0].mxu0
        %v814 = vadd.f32 %v664, %v813
        %v815 = vpop.f32.mrb[0].mxu0
        %v816 = vadd.f32 %v668, %v815
        %817 = vmatprep.mubr.f32.mxu0 %v324
        %818 = vmatmul.mubr.f32.gmra.mrb[0].mxu0 %v323
        %v819 = vpop.f32.mrb[0].mxu0
        %v820 = vadd.f32 %v664, %v819
        %v821 = vpop.f32.mrb[0].mxu0
        %v822 = vadd.f32 %v668, %v821
        %823 = vmatprep.mubr.f32.mxu0 %v328
        %824 = vmatmul.mubr.f32.gmra.mrb[0].mxu0 %v327
        %v825 = vpop.f32.mrb[0].mxu0
        %v826 = vadd.f32 %v664, %v825
        %v827 = vpop.f32.mrb[0].mxu0
        %v828 = vadd.f32 %v668, %v827
        %829 = vmatprep.mubr.f32.mxu0 %v332
        %830 = vmatmul.mubr.f32.gmra.mrb[0].mxu0 %v331
        %v831 = vpop.f32.mrb[0].mxu0
        %v832 = vadd.f32 %v664, %v831
        %v833 = vpop.f32.mrb[0].mxu0
        %v834 = vadd.f32 %v668, %v833
        %835 = vmatprep.mubr.f32.mxu0 %v336
        %836 = vmatmul.mubr.f32.gmra.mrb[0].mxu0 %v335
        %v837 = vpop.f32.mrb[0].mxu0
        %v838 = vadd.f32 %v664, %v837
        %v839 = vpop.f32.mrb[0].mxu0
        %v840 = vadd.f32 %v668, %v839
        %841 = vmatprep.mubr.f32.mxu0 %v340
        %842 = vmatmul.mubr.f32.gmra.mrb[0].mxu0 %v339
        %v843 = vpop.f32.mrb[0].mxu0
        %v844 = vadd.f32 %v664, %v843
        %v845 = vpop.f32.mrb[0].mxu0
        %v846 = vadd.f32 %v668, %v845
        %847 = vmatprep.mubr.f32.mxu0 %v344
        %848 = vmatmul.mubr.f32.gmra.mrb[0].mxu0 %v343
        %v849 = vpop.f32.mrb[0].mxu0
        %v850 = vadd.f32 %v664, %v849
        %v851 = vpop.f32.mrb[0].mxu0
        %v852 = vadd.f32 %v668, %v851
        %853 = vmatprep.mubr.f32.mxu0 %v348
        %854 = vmatmul.mubr.f32.gmra.mrb[0].mxu0 %v347
        %v855 = vpop.f32.mrb[0].mxu0
        %v856 = vadd.f32 %v664, %v855
        %v857 = vpop.f32.mrb[0].mxu0
        %v858 = vadd.f32 %v668, %v857
        %859 = vmatprep.mubr.f32.mxu0 %v352
        %860 = vmatmul.mubr.f32.gmra.mrb[0].mxu0 %v351
        %v861 = vpop.f32.mrb[0].mxu0
        %v862 = vadd.f32 %v664, %v861
        %v863 = vpop.f32.mrb[0].mxu0
        %v864 = vadd.f32 %v668, %v863
        %865 = vmatprep.mubr.f32.mxu0 %v356
        %866 = vmatmul.mubr.f32.gmra.mrb[0].mxu0 %v355
        %v867 = vpop.f32.mrb[0].mxu0
        %v868 = vadd.f32 %v664, %v867
        %v869 = vpop.f32.mrb[0].mxu0
        %v870 = vadd.f32 %v668, %v869
        %871 = vmatprep.mubr.f32.mxu0 %v360
        %872 = vmatmul.mubr.f32.gmra.mrb[0].mxu0 %v359
        %v873 = vpop.f32.mrb[0].mxu0
        %v874 = vadd.f32 %v664, %v873
        %v875 = vpop.f32.mrb[0].mxu0
        %v876 = vadd.f32 %v668, %v875
        %877 = vmatprep.mubr.f32.mxu0 %v364
        %878 = vmatmul.mubr.f32.gmra.mrb[0].mxu0 %v363
        %v879 = vpop.f32.mrb[0].mxu0
        %v880 = vadd.f32 %v664, %v879
        %v881 = vpop.f32.mrb[0].mxu0
        %v882 = vadd.f32 %v668, %v881
        %883 = vmatprep.mubr.f32.mxu0 %v368
        %884 = vmatmul.mubr.f32.gmra.mrb[0].mxu0 %v367
        %v885 = vpop.f32.mrb[0].mxu0
        %v886 = vadd.f32 %v664, %v885
        %v887 = vpop.f32.mrb[0].mxu0
        %v888 = vadd.f32 %v668, %v887
        %889 = vmatprep.mubr.f32.mxu0 %v372
        %890 = vmatmul.mubr.f32.gmra.mrb[0].mxu0 %v371
        %v891 = vpop.f32.mrb[0].mxu0
        %v892 = vadd.f32 %v664, %v891
        %v893 = vpop.f32.mrb[0].mxu0
        %v894 = vadd.f32 %v668, %v893
        %895 = vmatprep.mubr.f32.mxu0 %v376
        %896 = vmatmul.mubr.f32.gmra.mrb[0].mxu0 %v375
        %v897 = vpop.f32.mrb[0].mxu0
        %v898 = vadd.f32 %v664, %v897
        %v899 = vpop.f32.mrb[0].mxu0
        %v900 = vadd.f32 %v668, %v899
        %901 = vmatprep.mubr.f32.mxu0 %v380
        %902 = vmatmul.mubr.f32.gmra.mrb[0].mxu0 %v379
        %v903 = vpop.f32.mrb[0].mxu0
        %v904 = vadd.f32 %v664, %v903
        %v905 = vpop.f32.mrb[0].mxu0
        %v906 = vadd.f32 %v668, %v905
        %907 = vmatprep.mubr.f32.mxu0 %v384
        %908 = vmatmul.mubr.f32.gmra.mrb[0].mxu0 %v383
        %v909 = vpop.f32.mrb[0].mxu0
        %v910 = vadd.f32 %v664, %v909
        %v911 = vpop.f32.mrb[0].mxu0
        %v912 = vadd.f32 %v668, %v911
        %913 = vmatprep.mubr.f32.mxu0 %v388
        %914 = vmatmul.mubr.f32.gmra.mrb[0].mxu0 %v387
        %v915 = vpop.f32.mrb[0].mxu0
        %v916 = vadd.f32 %v664, %v915
        %v917 = vpop.f32.mrb[0].mxu0
        %v918 = vadd.f32 %v668, %v917
        %919 = vmatprep.mubr.f32.mxu0 %v392
        %920 = vmatmul.mubr.f32.gmra.mrb[0].mxu0 %v391
        %v921 = vpop.f32.mrb[0].mxu0
        %v922 = vadd.f32 %v664, %v921
        %v923 = vpop.f32.mrb[0].mxu0
        %v924 = vadd.f32 %v668, %v923
        %925 = vmatprep.mubr.f32.mxu0 %v396
        %926 = vmatmul.mubr.f32.gmra.mrb[0].mxu0 %v395
        %v927 = vpop.f32.mrb[0].mxu0
        %v928 = vadd.f32 %v664, %v927
        %v929 = vpop.f32.mrb[0].mxu0
        %v930 = vadd.f32 %v668, %v929
        %931 = vmatprep.mubr.f32.mxu0 %v400
        %932 = vmatmul.mubr.f32.gmra.mrb[0].mxu0 %v399
        %v933 = vpop.f32.mrb[0].mxu0
        %v934 = vadd.f32 %v664, %v933
        %v935 = vpop.f32.mrb[0].mxu0
        %v936 = vadd.f32 %v668, %v935
        %937 = vdwg.mxu0
        %938 = vmatprep.subr.mxu0 %v532
        %939 = vmatpush1.msra.mxu0 %v531
        %940 = vmatprep.subr.mxu0 %v536
        %941 = vmatpush1.msra.mxu0 %v535
        %942 = vmatprep.subr.mxu0 %v540
        %943 = vmatpush1.msra.mxu0 %v539
        %944 = vmatprep.subr.mxu0 %v544
        %945 = vmatpush1.msra.mxu0 %v543
        %946 = vmatprep.subr.mxu0 %v548
        %947 = vmatpush1.msra.mxu0 %v547
        %948 = vmatprep.subr.mxu0 %v552
        %949 = vmatpush1.msra.mxu0 %v551
        %950 = vmatprep.subr.mxu0 %v556
        %951 = vmatpush1.msra.mxu0 %v555
        %952 = vmatprep.subr.mxu0 %v560
        %953 = vmatpush1.msra.mxu0 %v559
        %954 = vmatprep.subr.mxu0 %v564
        %955 = vmatpush1.msra.mxu0 %v563
        %956 = vmatprep.subr.mxu0 %v568
        %957 = vmatpush1.msra.mxu0 %v567
        %958 = vmatprep.subr.mxu0 %v572
        %959 = vmatpush1.msra.mxu0 %v571
        %960 = vmatprep.subr.mxu0 %v576
        %961 = vmatpush1.msra.mxu0 %v575
        %962 = vmatprep.subr.mxu0 %v580
        %963 = vmatpush1.msra.mxu0 %v579
        %964 = vmatprep.subr.mxu0 %v584
        %965 = vmatpush1.msra.mxu0 %v583
        %966 = vmatprep.subr.mxu0 %v588
        %967 = vmatpush1.msra.mxu0 %v587
        %968 = vmatprep.subr.mxu0 %v592
        %969 = vmatpush1.msra.mxu0 %v591
        %970 = vmatprep.subr.mxu0 %v596
        %971 = vmatpush1.msra.mxu0 %v595
        %972 = vmatprep.subr.mxu0 %v600
        %973 = vmatpush1.msra.mxu0 %v599
        %974 = vmatprep.subr.mxu0 %v604
        %975 = vmatpush1.msra.mxu0 %v603
        %976 = vmatprep.subr.mxu0 %v608
        %977 = vmatpush1.msra.mxu0 %v607
        %978 = vmatprep.subr.mxu0 %v612
        %979 = vmatpush1.msra.mxu0 %v611
        %980 = vmatprep.subr.mxu0 %v616
        %981 = vmatpush1.msra.mxu0 %v615
        %982 = vmatprep.subr.mxu0 %v620
        %983 = vmatpush1.msra.mxu0 %v619
        %984 = vmatprep.subr.mxu0 %v624
        %985 = vmatpush1.msra.mxu0 %v623
        %986 = vmatprep.subr.mxu0 %v628
        %987 = vmatpush1.msra.mxu0 %v627
        %988 = vmatprep.subr.mxu0 %v632
        %989 = vmatpush1.msra.mxu0 %v631
        %990 = vmatprep.subr.mxu0 %v636
        %991 = vmatpush1.msra.mxu0 %v635
        %992 = vmatprep.subr.mxu0 %v640
        %993 = vmatpush1.msra.mxu0 %v639
        %994 = vmatprep.subr.mxu0 %v644
        %995 = vmatpush1.msra.mxu0 %v643
        %996 = vmatprep.subr.mxu0 %v648
        %997 = vmatpush1.msra.mxu0 %v647
        %998 = vmatprep.subr.mxu0 %v652
        %999 = vmatpush1.msra.mxu0 %v651
        %1000 = vmatprep.subr.mxu0 %v656
        %1001 = vmatpush1.msra.mxu0 %v655
        %1002 = vmatprep.mubr.f32.mxu0 %v278
        %1003 = vmatmul.mubr.f32.gmra.mrb[0].mxu0 %v277
        %v1004 = vpop.f32.mrb[0].mxu0
        %v1005 = vadd.f32 %v748, %v1004
        %v1006 = vpop.f32.mrb[0].mxu0
        %v1007 = vadd.f32 %v750, %v1006
        %1008 = vmatprep.mubr.f32.mxu0 %v282
        %1009 = vmatmul.mubr.f32.gmra.mrb[0].mxu0 %v281
        %v1010 = vpop.f32.mrb[0].mxu0
        %v1011 = vadd.f32 %v754, %v1010
        %v1012 = vpop.f32.mrb[0].mxu0
        %v1013 = vadd.f32 %v756, %v1012
        %1014 = vmatprep.mubr.f32.mxu0 %v286
        %1015 = vmatmul.mubr.f32.gmra.mrb[0].mxu0 %v285
        %v1016 = vpop.f32.mrb[0].mxu0
        %v1017 = vadd.f32 %v760, %v1016
        %v1018 = vpop.f32.mrb[0].mxu0
        %v1019 = vadd.f32 %v762, %v1018
        %1020 = vmatprep.mubr.f32.mxu0 %v290
        %1021 = vmatmul.mubr.f32.gmra.mrb[0].mxu0 %v289
        %v1022 = vpop.f32.mrb[0].mxu0
        %v1023 = vadd.f32 %v766, %v1022
        %v1024 = vpop.f32.mrb[0].mxu0
        %v1025 = vadd.f32 %v768, %v1024
        %1026 = vmatprep.mubr.f32.mxu0 %v294
        %1027 = vmatmul.mubr.f32.gmra.mrb[0].mxu0 %v293
        %v1028 = vpop.f32.mrb[0].mxu0
        %v1029 = vadd.f32 %v772, %v1028
        %v1030 = vpop.f32.mrb[0].mxu0
        %v1031 = vadd.f32 %v774, %v1030
        %1032 = vmatprep.mubr.f32.mxu0 %v298
        %1033 = vmatmul.mubr.f32.gmra.mrb[0].mxu0 %v297
        %v1034 = vpop.f32.mrb[0].mxu0
        %v1035 = vadd.f32 %v778, %v1034
        %v1036 = vpop.f32.mrb[0].mxu0
        %v1037 = vadd.f32 %v780, %v1036
        %1038 = vmatprep.mubr.f32.mxu0 %v302
        %1039 = vmatmul.mubr.f32.gmra.mrb[0].mxu0 %v301
        %v1040 = vpop.f32.mrb[0].mxu0
        %v1041 = vadd.f32 %v784, %v1040
        %v1042 = vpop.f32.mrb[0].mxu0
        %v1043 = vadd.f32 %v786, %v1042
        %1044 = vmatprep.mubr.f32.mxu0 %v306
        %1045 = vmatmul.mubr.f32.gmra.mrb[0].mxu0 %v305
        %v1046 = vpop.f32.mrb[0].mxu0
        %v1047 = vadd.f32 %v790, %v1046
        %v1048 = vpop.f32.mrb[0].mxu0
        %v1049 = vadd.f32 %v792, %v1048
        %1050 = vmatprep.mubr.f32.mxu0 %v310
        %1051 = vmatmul.mubr.f32.gmra.mrb[0].mxu0 %v309
        %v1052 = vpop.f32.mrb[0].mxu0
        %v1053 = vadd.f32 %v796, %v1052
        %v1054 = vpop.f32.mrb[0].mxu0
        %v1055 = vadd.f32 %v798, %v1054
        %1056 = vmatprep.mubr.f32.mxu0 %v314
        %1057 = vmatmul.mubr.f32.gmra.mrb[0].mxu0 %v313
        %v1058 = vpop.f32.mrb[0].mxu0
        %v1059 = vadd.f32 %v802, %v1058
        %v1060 = vpop.f32.mrb[0].mxu0
        %v1061 = vadd.f32 %v804, %v1060
        %1062 = vmatprep.mubr.f32.mxu0 %v318
        %1063 = vmatmul.mubr.f32.gmra.mrb[0].mxu0 %v317
        %v1064 = vpop.f32.mrb[0].mxu0
        %v1065 = vadd.f32 %v808, %v1064
        %v1066 = vpop.f32.mrb[0].mxu0
        %v1067 = vadd.f32 %v810, %v1066
        %1068 = vmatprep.mubr.f32.mxu0 %v322
        %1069 = vmatmul.mubr.f32.gmra.mrb[0].mxu0 %v321
        %v1070 = vpop.f32.mrb[0].mxu0
        %v1071 = vadd.f32 %v814, %v1070
        %v1072 = vpop.f32.mrb[0].mxu0
        %v1073 = vadd.f32 %v816, %v1072
        %1074 = vmatprep.mubr.f32.mxu0 %v326
        %1075 = vmatmul.mubr.f32.gmra.mrb[0].mxu0 %v325
        %v1076 = vpop.f32.mrb[0].mxu0
        %v1077 = vadd.f32 %v820, %v1076
        %v1078 = vpop.f32.mrb[0].mxu0
        %v1079 = vadd.f32 %v822, %v1078
        %1080 = vmatprep.mubr.f32.mxu0 %v330
        %1081 = vmatmul.mubr.f32.gmra.mrb[0].mxu0 %v329
        %v1082 = vpop.f32.mrb[0].mxu0
        %v1083 = vadd.f32 %v826, %v1082
        %v1084 = vpop.f32.mrb[0].mxu0
        %v1085 = vadd.f32 %v828, %v1084
        %1086 = vmatprep.mubr.f32.mxu0 %v334
        %1087 = vmatmul.mubr.f32.gmra.mrb[0].mxu0 %v333
        %v1088 = vpop.f32.mrb[0].mxu0
        %v1089 = vadd.f32 %v832, %v1088
        %v1090 = vpop.f32.mrb[0].mxu0
        %v1091 = vadd.f32 %v834, %v1090
        %1092 = vmatprep.mubr.f32.mxu0 %v338
        %1093 = vmatmul.mubr.f32.gmra.mrb[0].mxu0 %v337
        %v1094 = vpop.f32.mrb[0].mxu0
        %v1095 = vadd.f32 %v838, %v1094
        %v1096 = vpop.f32.mrb[0].mxu0
        %v1097 = vadd.f32 %v840, %v1096
        %1098 = vmatprep.mubr.f32.mxu0 %v342
        %1099 = vmatmul.mubr.f32.gmra.mrb[0].mxu0 %v341
        %v1100 = vpop.f32.mrb[0].mxu0
        %v1101 = vadd.f32 %v844, %v1100
        %v1102 = vpop.f32.mrb[0].mxu0
        %v1103 = vadd.f32 %v846, %v1102
        %1104 = vmatprep.mubr.f32.mxu0 %v346
        %1105 = vmatmul.mubr.f32.gmra.mrb[0].mxu0 %v345
        %v1106 = vpop.f32.mrb[0].mxu0
        %v1107 = vadd.f32 %v850, %v1106
        %v1108 = vpop.f32.mrb[0].mxu0
        %v1109 = vadd.f32 %v852, %v1108
        %1110 = vmatprep.mubr.f32.mxu0 %v350
        %1111 = vmatmul.mubr.f32.gmra.mrb[0].mxu0 %v349
        %v1112 = vpop.f32.mrb[0].mxu0
        %v1113 = vadd.f32 %v856, %v1112
        %v1114 = vpop.f32.mrb[0].mxu0
        %v1115 = vadd.f32 %v858, %v1114
        %1116 = vmatprep.mubr.f32.mxu0 %v354
        %1117 = vmatmul.mubr.f32.gmra.mrb[0].mxu0 %v353
        %v1118 = vpop.f32.mrb[0].mxu0
        %v1119 = vadd.f32 %v862, %v1118
        %v1120 = vpop.f32.mrb[0].mxu0
        %v1121 = vadd.f32 %v864, %v1120
        %1122 = vmatprep.mubr.f32.mxu0 %v358
        %1123 = vmatmul.mubr.f32.gmra.mrb[0].mxu0 %v357
        %v1124 = vpop.f32.mrb[0].mxu0
        %v1125 = vadd.f32 %v868, %v1124
        %v1126 = vpop.f32.mrb[0].mxu0
        %v1127 = vadd.f32 %v870, %v1126
        %1128 = vmatprep.mubr.f32.mxu0 %v362
        %1129 = vmatmul.mubr.f32.gmra.mrb[0].mxu0 %v361
        %v1130 = vpop.f32.mrb[0].mxu0
        %v1131 = vadd.f32 %v874, %v1130
        %v1132 = vpop.f32.mrb[0].mxu0
        %v1133 = vadd.f32 %v876, %v1132
        %1134 = vmatprep.mubr.f32.mxu0 %v366
        %1135 = vmatmul.mubr.f32.gmra.mrb[0].mxu0 %v365
        %v1136 = vpop.f32.mrb[0].mxu0
        %v1137 = vadd.f32 %v880, %v1136
        %v1138 = vpop.f32.mrb[0].mxu0
        %v1139 = vadd.f32 %v882, %v1138
        %1140 = vmatprep.mubr.f32.mxu0 %v370
        %1141 = vmatmul.mubr.f32.gmra.mrb[0].mxu0 %v369
        %v1142 = vpop.f32.mrb[0].mxu0
        %v1143 = vadd.f32 %v886, %v1142
        %v1144 = vpop.f32.mrb[0].mxu0
        %v1145 = vadd.f32 %v888, %v1144
        %1146 = vmatprep.mubr.f32.mxu0 %v374
        %1147 = vmatmul.mubr.f32.gmra.mrb[0].mxu0 %v373
        %v1148 = vpop.f32.mrb[0].mxu0
        %v1149 = vadd.f32 %v892, %v1148
        %v1150 = vpop.f32.mrb[0].mxu0
        %v1151 = vadd.f32 %v894, %v1150
        %1152 = vmatprep.mubr.f32.mxu0 %v378
        %1153 = vmatmul.mubr.f32.gmra.mrb[0].mxu0 %v377
        %v1154 = vpop.f32.mrb[0].mxu0
        %v1155 = vadd.f32 %v898, %v1154
        %v1156 = vpop.f32.mrb[0].mxu0
        %v1157 = vadd.f32 %v900, %v1156
        %1158 = vmatprep.mubr.f32.mxu0 %v382
        %1159 = vmatmul.mubr.f32.gmra.mrb[0].mxu0 %v381
        %v1160 = vpop.f32.mrb[0].mxu0
        %v1161 = vadd.f32 %v904, %v1160
        %v1162 = vpop.f32.mrb[0].mxu0
        %v1163 = vadd.f32 %v906, %v1162
        %1164 = vmatprep.mubr.f32.mxu0 %v386
        %1165 = vmatmul.mubr.f32.gmra.mrb[0].mxu0 %v385
        %v1166 = vpop.f32.mrb[0].mxu0
        %v1167 = vadd.f32 %v910, %v1166
        %v1168 = vpop.f32.mrb[0].mxu0
        %v1169 = vadd.f32 %v912, %v1168
        %1170 = vmatprep.mubr.f32.mxu0 %v390
        %1171 = vmatmul.mubr.f32.gmra.mrb[0].mxu0 %v389
        %v1172 = vpop.f32.mrb[0].mxu0
        %v1173 = vadd.f32 %v916, %v1172
        %v1174 = vpop.f32.mrb[0].mxu0
        %v1175 = vadd.f32 %v918, %v1174
        %1176 = vmatprep.mubr.f32.mxu0 %v394
        %1177 = vmatmul.mubr.f32.gmra.mrb[0].mxu0 %v393
        %v1178 = vpop.f32.mrb[0].mxu0
        %v1179 = vadd.f32 %v922, %v1178
        %v1180 = vpop.f32.mrb[0].mxu0
        %v1181 = vadd.f32 %v924, %v1180
        %1182 = vmatprep.mubr.f32.mxu0 %v398
        %1183 = vmatmul.mubr.f32.gmra.mrb[0].mxu0 %v397
        %v1184 = vpop.f32.mrb[0].mxu0
        %v1185 = vadd.f32 %v928, %v1184
        %v1186 = vpop.f32.mrb[0].mxu0
        %v1187 = vadd.f32 %v930, %v1186
        %1188 = vmatprep.mubr.f32.mxu0 %v402
        %1189 = vmatmul.mubr.f32.gmra.mrb[0].mxu0 %v401
        %v1190 = vpop.f32.mrb[0].mxu0
        %v1191 = vadd.f32 %v934, %v1190
        %v1192 = vpop.f32.mrb[0].mxu0
        %v1193 = vadd.f32 %v936, %v1192
        %1194 = vdwg.mxu0
        %1195 = vmatprep.subr.mxu0 %v406
        %1196 = vmatpush1.msra.mxu0 %v405
        %1197 = vmatprep.subr.mxu0 %v410
        %1198 = vmatpush1.msra.mxu0 %v409
        %1199 = vmatprep.subr.mxu0 %v414
        %1200 = vmatpush1.msra.mxu0 %v413
        %1201 = vmatprep.subr.mxu0 %v418
        %1202 = vmatpush1.msra.mxu0 %v417
        %1203 = vmatprep.subr.mxu0 %v422
        %1204 = vmatpush1.msra.mxu0 %v421
        %1205 = vmatprep.subr.mxu0 %v426
        %1206 = vmatpush1.msra.mxu0 %v425
        %1207 = vmatprep.subr.mxu0 %v430
        %1208 = vmatpush1.msra.mxu0 %v429
        %1209 = vmatprep.subr.mxu0 %v434
        %1210 = vmatpush1.msra.mxu0 %v433
        %1211 = vmatprep.subr.mxu0 %v438
        %1212 = vmatpush1.msra.mxu0 %v437
        %1213 = vmatprep.subr.mxu0 %v442
        %1214 = vmatpush1.msra.mxu0 %v441
        %1215 = vmatprep.subr.mxu0 %v446
        %1216 = vmatpush1.msra.mxu0 %v445
        %1217 = vmatprep.subr.mxu0 %v450
        %1218 = vmatpush1.msra.mxu0 %v449
        %1219 = vmatprep.subr.mxu0 %v454
        %1220 = vmatpush1.msra.mxu0 %v453
        %1221 = vmatprep.subr.mxu0 %v458
        %1222 = vmatpush1.msra.mxu0 %v457
        %1223 = vmatprep.subr.mxu0 %v462
        %1224 = vmatpush1.msra.mxu0 %v461
        %1225 = vmatprep.subr.mxu0 %v466
        %1226 = vmatpush1.msra.mxu0 %v465
        %1227 = vmatprep.subr.mxu0 %v470
        %1228 = vmatpush1.msra.mxu0 %v469
        %1229 = vmatprep.subr.mxu0 %v474
        %1230 = vmatpush1.msra.mxu0 %v473
        %1231 = vmatprep.subr.mxu0 %v478
        %1232 = vmatpush1.msra.mxu0 %v477
        %1233 = vmatprep.subr.mxu0 %v482
        %1234 = vmatpush1.msra.mxu0 %v481
        %1235 = vmatprep.subr.mxu0 %v486
        %1236 = vmatpush1.msra.mxu0 %v485
        %1237 = vmatprep.subr.mxu0 %v490
        %1238 = vmatpush1.msra.mxu0 %v489
        %1239 = vmatprep.subr.mxu0 %v494
        %1240 = vmatpush1.msra.mxu0 %v493
        %1241 = vmatprep.subr.mxu0 %v498
        %1242 = vmatpush1.msra.mxu0 %v497
        %1243 = vmatprep.subr.mxu0 %v502
        %1244 = vmatpush1.msra.mxu0 %v501
        %1245 = vmatprep.subr.mxu0 %v506
        %1246 = vmatpush1.msra.mxu0 %v505
        %1247 = vmatprep.subr.mxu0 %v510
        %1248 = vmatpush1.msra.mxu0 %v509
        %1249 = vmatprep.subr.mxu0 %v514
        %1250 = vmatpush1.msra.mxu0 %v513
        %1251 = vmatprep.subr.mxu0 %v518
        %1252 = vmatpush1.msra.mxu0 %v517
        %1253 = vmatprep.subr.mxu0 %v522
        %1254 = vmatpush1.msra.mxu0 %v521
        %1255 = vmatprep.subr.mxu0 %v526
        %1256 = vmatpush1.msra.mxu0 %v525
        %1257 = vmatprep.subr.mxu0 %v530
        %1258 = vmatpush1.msra.mxu0 %v529
        %1259 = vmatprep.mubr.f32.mxu0 %v276
        %1260 = vmatmul.mubr.f32.gmra.mrb[0].mxu0 %v275
        %v1261 = vpop.f32.mrb[0].mxu0
        %v1262 = vadd.f32 %v672, %v1261
        %v1263 = vpop.f32.mrb[0].mxu0
        %v1264 = vadd.f32 %v676, %v1263
        %1265 = vmatprep.mubr.f32.mxu0 %v280
        %1266 = vmatmul.mubr.f32.gmra.mrb[0].mxu0 %v279
        %v1267 = vpop.f32.mrb[0].mxu0
        %v1268 = vadd.f32 %v672, %v1267
        %v1269 = vpop.f32.mrb[0].mxu0
        %v1270 = vadd.f32 %v676, %v1269
        %1271 = vmatprep.mubr.f32.mxu0 %v284
        %1272 = vmatmul.mubr.f32.gmra.mrb[0].mxu0 %v283
        %v1273 = vpop.f32.mrb[0].mxu0
        %v1274 = vadd.f32 %v672, %v1273
        %v1275 = vpop.f32.mrb[0].mxu0
        %v1276 = vadd.f32 %v676, %v1275
        %1277 = vmatprep.mubr.f32.mxu0 %v288
        %1278 = vmatmul.mubr.f32.gmra.mrb[0].mxu0 %v287
        %v1279 = vpop.f32.mrb[0].mxu0
        %v1280 = vadd.f32 %v672, %v1279
        %v1281 = vpop.f32.mrb[0].mxu0
        %v1282 = vadd.f32 %v676, %v1281
        %1283 = vmatprep.mubr.f32.mxu0 %v292
        %1284 = vmatmul.mubr.f32.gmra.mrb[0].mxu0 %v291
        %v1285 = vpop.f32.mrb[0].mxu0
        %v1286 = vadd.f32 %v672, %v1285
        %v1287 = vpop.f32.mrb[0].mxu0
        %v1288 = vadd.f32 %v676, %v1287
        %1289 = vmatprep.mubr.f32.mxu0 %v296
        %1290 = vmatmul.mubr.f32.gmra.mrb[0].mxu0 %v295
        %v1291 = vpop.f32.mrb[0].mxu0
        %v1292 = vadd.f32 %v672, %v1291
        %v1293 = vpop.f32.mrb[0].mxu0
        %v1294 = vadd.f32 %v676, %v1293
        %1295 = vmatprep.mubr.f32.mxu0 %v300
        %1296 = vmatmul.mubr.f32.gmra.mrb[0].mxu0 %v299
        %v1297 = vpop.f32.mrb[0].mxu0
        %v1298 = vadd.f32 %v672, %v1297
        %v1299 = vpop.f32.mrb[0].mxu0
        %v1300 = vadd.f32 %v676, %v1299
        %1301 = vmatprep.mubr.f32.mxu0 %v304
        %1302 = vmatmul.mubr.f32.gmra.mrb[0].mxu0 %v303
        %v1303 = vpop.f32.mrb[0].mxu0
        %v1304 = vadd.f32 %v672, %v1303
        %v1305 = vpop.f32.mrb[0].mxu0
        %v1306 = vadd.f32 %v676, %v1305
        %1307 = vmatprep.mubr.f32.mxu0 %v308
        %1308 = vmatmul.mubr.f32.gmra.mrb[0].mxu0 %v307
        %v1309 = vpop.f32.mrb[0].mxu0
        %v1310 = vadd.f32 %v672, %v1309
        %v1311 = vpop.f32.mrb[0].mxu0
        %v1312 = vadd.f32 %v676, %v1311
        %1313 = vmatprep.mubr.f32.mxu0 %v312
        %1314 = vmatmul.mubr.f32.gmra.mrb[0].mxu0 %v311
        %v1315 = vpop.f32.mrb[0].mxu0
        %v1316 = vadd.f32 %v672, %v1315
        %v1317 = vpop.f32.mrb[0].mxu0
        %v1318 = vadd.f32 %v676, %v1317
        %1319 = vmatprep.mubr.f32.mxu0 %v316
        %1320 = vmatmul.mubr.f32.gmra.mrb[0].mxu0 %v315
        %v1321 = vpop.f32.mrb[0].mxu0
        %v1322 = vadd.f32 %v672, %v1321
        %v1323 = vpop.f32.mrb[0].mxu0
        %v1324 = vadd.f32 %v676, %v1323
        %1325 = vmatprep.mubr.f32.mxu0 %v320
        %1326 = vmatmul.mubr.f32.gmra.mrb[0].mxu0 %v319
        %v1327 = vpop.f32.mrb[0].mxu0
        %v1328 = vadd.f32 %v672, %v1327
        %v1329 = vpop.f32.mrb[0].mxu0
        %v1330 = vadd.f32 %v676, %v1329
        %1331 = vmatprep.mubr.f32.mxu0 %v324
        %1332 = vmatmul.mubr.f32.gmra.mrb[0].mxu0 %v323
        %v1333 = vpop.f32.mrb[0].mxu0
        %v1334 = vadd.f32 %v672, %v1333
        %v1335 = vpop.f32.mrb[0].mxu0
        %v1336 = vadd.f32 %v676, %v1335
        %1337 = vmatprep.mubr.f32.mxu0 %v328
        %1338 = vmatmul.mubr.f32.gmra.mrb[0].mxu0 %v327
        %v1339 = vpop.f32.mrb[0].mxu0
        %v1340 = vadd.f32 %v672, %v1339
        %v1341 = vpop.f32.mrb[0].mxu0
        %v1342 = vadd.f32 %v676, %v1341
        %1343 = vmatprep.mubr.f32.mxu0 %v332
        %1344 = vmatmul.mubr.f32.gmra.mrb[0].mxu0 %v331
        %v1345 = vpop.f32.mrb[0].mxu0
        %v1346 = vadd.f32 %v672, %v1345
        %v1347 = vpop.f32.mrb[0].mxu0
        %v1348 = vadd.f32 %v676, %v1347
        %1349 = vmatprep.mubr.f32.mxu0 %v336
        %1350 = vmatmul.mubr.f32.gmra.mrb[0].mxu0 %v335
        %v1351 = vpop.f32.mrb[0].mxu0
        %v1352 = vadd.f32 %v672, %v1351
        %v1353 = vpop.f32.mrb[0].mxu0
        %v1354 = vadd.f32 %v676, %v1353
        %1355 = vmatprep.mubr.f32.mxu0 %v340
        %1356 = vmatmul.mubr.f32.gmra.mrb[0].mxu0 %v339
        %v1357 = vpop.f32.mrb[0].mxu0
        %v1358 = vadd.f32 %v672, %v1357
        %v1359 = vpop.f32.mrb[0].mxu0
        %v1360 = vadd.f32 %v676, %v1359
        %1361 = vmatprep.mubr.f32.mxu0 %v344
        %1362 = vmatmul.mubr.f32.gmra.mrb[0].mxu0 %v343
        %v1363 = vpop.f32.mrb[0].mxu0
        %v1364 = vadd.f32 %v672, %v1363
        %v1365 = vpop.f32.mrb[0].mxu0
        %v1366 = vadd.f32 %v676, %v1365
        %1367 = vmatprep.mubr.f32.mxu0 %v348
        %1368 = vmatmul.mubr.f32.gmra.mrb[0].mxu0 %v347
        %v1369 = vpop.f32.mrb[0].mxu0
        %v1370 = vadd.f32 %v672, %v1369
        %v1371 = vpop.f32.mrb[0].mxu0
        %v1372 = vadd.f32 %v676, %v1371
        %1373 = vmatprep.mubr.f32.mxu0 %v352
        %1374 = vmatmul.mubr.f32.gmra.mrb[0].mxu0 %v351
        %v1375 = vpop.f32.mrb[0].mxu0
        %v1376 = vadd.f32 %v672, %v1375
        %v1377 = vpop.f32.mrb[0].mxu0
        %v1378 = vadd.f32 %v676, %v1377
        %1379 = vmatprep.mubr.f32.mxu0 %v356
        %1380 = vmatmul.mubr.f32.gmra.mrb[0].mxu0 %v355
        %v1381 = vpop.f32.mrb[0].mxu0
        %v1382 = vadd.f32 %v672, %v1381
        %v1383 = vpop.f32.mrb[0].mxu0
        %v1384 = vadd.f32 %v676, %v1383
        %1385 = vmatprep.mubr.f32.mxu0 %v360
        %1386 = vmatmul.mubr.f32.gmra.mrb[0].mxu0 %v359
        %v1387 = vpop.f32.mrb[0].mxu0
        %v1388 = vadd.f32 %v672, %v1387
        %v1389 = vpop.f32.mrb[0].mxu0
        %v1390 = vadd.f32 %v676, %v1389
        %1391 = vmatprep.mubr.f32.mxu0 %v364
        %1392 = vmatmul.mubr.f32.gmra.mrb[0].mxu0 %v363
        %v1393 = vpop.f32.mrb[0].mxu0
        %v1394 = vadd.f32 %v672, %v1393
        %v1395 = vpop.f32.mrb[0].mxu0
        %v1396 = vadd.f32 %v676, %v1395
        %1397 = vmatprep.mubr.f32.mxu0 %v368
        %1398 = vmatmul.mubr.f32.gmra.mrb[0].mxu0 %v367
        %v1399 = vpop.f32.mrb[0].mxu0
        %v1400 = vadd.f32 %v672, %v1399
        %v1401 = vpop.f32.mrb[0].mxu0
        %v1402 = vadd.f32 %v676, %v1401
        %1403 = vmatprep.mubr.f32.mxu0 %v372
        %1404 = vmatmul.mubr.f32.gmra.mrb[0].mxu0 %v371
        %v1405 = vpop.f32.mrb[0].mxu0
        %v1406 = vadd.f32 %v672, %v1405
        %v1407 = vpop.f32.mrb[0].mxu0
        %v1408 = vadd.f32 %v676, %v1407
        %1409 = vmatprep.mubr.f32.mxu0 %v376
        %1410 = vmatmul.mubr.f32.gmra.mrb[0].mxu0 %v375
        %v1411 = vpop.f32.mrb[0].mxu0
        %v1412 = vadd.f32 %v672, %v1411
        %v1413 = vpop.f32.mrb[0].mxu0
        %v1414 = vadd.f32 %v676, %v1413
        %1415 = vmatprep.mubr.f32.mxu0 %v380
        %1416 = vmatmul.mubr.f32.gmra.mrb[0].mxu0 %v379
        %v1417 = vpop.f32.mrb[0].mxu0
        %v1418 = vadd.f32 %v672, %v1417
        %v1419 = vpop.f32.mrb[0].mxu0
        %v1420 = vadd.f32 %v676, %v1419
        %1421 = vmatprep.mubr.f32.mxu0 %v384
        %1422 = vmatmul.mubr.f32.gmra.mrb[0].mxu0 %v383
        %v1423 = vpop.f32.mrb[0].mxu0
        %v1424 = vadd.f32 %v672, %v1423
        %v1425 = vpop.f32.mrb[0].mxu0
        %v1426 = vadd.f32 %v676, %v1425
        %1427 = vmatprep.mubr.f32.mxu0 %v388
        %1428 = vmatmul.mubr.f32.gmra.mrb[0].mxu0 %v387
        %v1429 = vpop.f32.mrb[0].mxu0
        %v1430 = vadd.f32 %v672, %v1429
        %v1431 = vpop.f32.mrb[0].mxu0
        %v1432 = vadd.f32 %v676, %v1431
        %1433 = vmatprep.mubr.f32.mxu0 %v392
        %1434 = vmatmul.mubr.f32.gmra.mrb[0].mxu0 %v391
        %v1435 = vpop.f32.mrb[0].mxu0
        %v1436 = vadd.f32 %v672, %v1435
        %v1437 = vpop.f32.mrb[0].mxu0
        %v1438 = vadd.f32 %v676, %v1437
        %1439 = vmatprep.mubr.f32.mxu0 %v396
        %1440 = vmatmul.mubr.f32.gmra.mrb[0].mxu0 %v395
        %v1441 = vpop.f32.mrb[0].mxu0
        %v1442 = vadd.f32 %v672, %v1441
        %v1443 = vpop.f32.mrb[0].mxu0
        %v1444 = vadd.f32 %v676, %v1443
        %1445 = vmatprep.mubr.f32.mxu0 %v400
        %1446 = vmatmul.mubr.f32.gmra.mrb[0].mxu0 %v399
        %v1447 = vpop.f32.mrb[0].mxu0
        %v1448 = vadd.f32 %v672, %v1447
        %v1449 = vpop.f32.mrb[0].mxu0
        %v1450 = vadd.f32 %v676, %v1449
        %1451 = vdwg.mxu0
        %1452 = vmatprep.subr.mxu0 %v534
        %1453 = vmatpush1.msra.mxu0 %v533
        %1454 = vmatprep.subr.mxu0 %v538
        %1455 = vmatpush1.msra.mxu0 %v537
        %1456 = vmatprep.subr.mxu0 %v542
        %1457 = vmatpush1.msra.mxu0 %v541
        %1458 = vmatprep.subr.mxu0 %v546
        %1459 = vmatpush1.msra.mxu0 %v545
        %1460 = vmatprep.subr.mxu0 %v550
        %1461 = vmatpush1.msra.mxu0 %v549
        %1462 = vmatprep.subr.mxu0 %v554
        %1463 = vmatpush1.msra.mxu0 %v553
        %1464 = vmatprep.subr.mxu0 %v558
        %1465 = vmatpush1.msra.mxu0 %v557
        %1466 = vmatprep.subr.mxu0 %v562
        %1467 = vmatpush1.msra.mxu0 %v561
        %1468 = vmatprep.subr.mxu0 %v566
        %1469 = vmatpush1.msra.mxu0 %v565
        %1470 = vmatprep.subr.mxu0 %v570
        %1471 = vmatpush1.msra.mxu0 %v569
        %1472 = vmatprep.subr.mxu0 %v574
        %1473 = vmatpush1.msra.mxu0 %v573
        %1474 = vmatprep.subr.mxu0 %v578
        %1475 = vmatpush1.msra.mxu0 %v577
        %1476 = vmatprep.subr.mxu0 %v582
        %1477 = vmatpush1.msra.mxu0 %v581
        %1478 = vmatprep.subr.mxu0 %v586
        %1479 = vmatpush1.msra.mxu0 %v585
        %1480 = vmatprep.subr.mxu0 %v590
        %1481 = vmatpush1.msra.mxu0 %v589
        %1482 = vmatprep.subr.mxu0 %v594
        %1483 = vmatpush1.msra.mxu0 %v593
        %1484 = vmatprep.subr.mxu0 %v598
        %1485 = vmatpush1.msra.mxu0 %v597
        %1486 = vmatprep.subr.mxu0 %v602
        %1487 = vmatpush1.msra.mxu0 %v601
        %1488 = vmatprep.subr.mxu0 %v606
        %1489 = vmatpush1.msra.mxu0 %v605
        %1490 = vmatprep.subr.mxu0 %v610
        %1491 = vmatpush1.msra.mxu0 %v609
        %1492 = vmatprep.subr.mxu0 %v614
        %1493 = vmatpush1.msra.mxu0 %v613
        %1494 = vmatprep.subr.mxu0 %v618
        %1495 = vmatpush1.msra.mxu0 %v617
        %1496 = vmatprep.subr.mxu0 %v622
        %1497 = vmatpush1.msra.mxu0 %v621
        %1498 = vmatprep.subr.mxu0 %v626
        %1499 = vmatpush1.msra.mxu0 %v625
        %1500 = vmatprep.subr.mxu0 %v630
        %1501 = vmatpush1.msra.mxu0 %v629
        %1502 = vmatprep.subr.mxu0 %v634
        %1503 = vmatpush1.msra.mxu0 %v633
        %1504 = vmatprep.subr.mxu0 %v638
        %1505 = vmatpush1.msra.mxu0 %v637
        %1506 = vmatprep.subr.mxu0 %v642
        %1507 = vmatpush1.msra.mxu0 %v641
        %1508 = vmatprep.subr.mxu0 %v646
        %1509 = vmatpush1.msra.mxu0 %v645
        %1510 = vmatprep.subr.mxu0 %v650
        %1511 = vmatpush1.msra.mxu0 %v649
        %1512 = vmatprep.subr.mxu0 %v654
        %1513 = vmatpush1.msra.mxu0 %v653
        %1514 = vmatprep.subr.mxu0 %v658
        %1515 = vmatpush1.msra.mxu0 %v657
        %1516 = vmatprep.mubr.f32.mxu0 %v278
        %1517 = vmatmul.mubr.f32.gmra.mrb[0].mxu0 %v277
        %v1518 = vpop.f32.mrb[0].mxu0
        %v1519 = vadd.f32 %v1262, %v1518
        %v1520 = vpop.f32.mrb[0].mxu0
        %v1521 = vadd.f32 %v1264, %v1520
        %1522 = vmatprep.mubr.f32.mxu0 %v282
        %1523 = vmatmul.mubr.f32.gmra.mrb[0].mxu0 %v281
        %v1524 = vpop.f32.mrb[0].mxu0
        %v1525 = vadd.f32 %v1268, %v1524
        %v1526 = vpop.f32.mrb[0].mxu0
        %v1527 = vadd.f32 %v1270, %v1526
        %1528 = vmatprep.mubr.f32.mxu0 %v286
        %1529 = vmatmul.mubr.f32.gmra.mrb[0].mxu0 %v285
        %v1530 = vpop.f32.mrb[0].mxu0
        %v1531 = vadd.f32 %v1274, %v1530
        %v1532 = vpop.f32.mrb[0].mxu0
        %v1533 = vadd.f32 %v1276, %v1532
        %1534 = vmatprep.mubr.f32.mxu0 %v290
        %1535 = vmatmul.mubr.f32.gmra.mrb[0].mxu0 %v289
        %v1536 = vpop.f32.mrb[0].mxu0
        %v1537 = vadd.f32 %v1280, %v1536
        %v1538 = vpop.f32.mrb[0].mxu0
        %v1539 = vadd.f32 %v1282, %v1538
        %1540 = vmatprep.mubr.f32.mxu0 %v294
        %1541 = vmatmul.mubr.f32.gmra.mrb[0].mxu0 %v293
        %v1542 = vpop.f32.mrb[0].mxu0
        %v1543 = vadd.f32 %v1286, %v1542
        %v1544 = vpop.f32.mrb[0].mxu0
        %v1545 = vadd.f32 %v1288, %v1544
        %1546 = vmatprep.mubr.f32.mxu0 %v298
        %1547 = vmatmul.mubr.f32.gmra.mrb[0].mxu0 %v297
        %v1548 = vpop.f32.mrb[0].mxu0
        %v1549 = vadd.f32 %v1292, %v1548
        %v1550 = vpop.f32.mrb[0].mxu0
        %v1551 = vadd.f32 %v1294, %v1550
        %1552 = vmatprep.mubr.f32.mxu0 %v302
        %1553 = vmatmul.mubr.f32.gmra.mrb[0].mxu0 %v301
        %v1554 = vpop.f32.mrb[0].mxu0
        %v1555 = vadd.f32 %v1298, %v1554
        %v1556 = vpop.f32.mrb[0].mxu0
        %v1557 = vadd.f32 %v1300, %v1556
        %1558 = vmatprep.mubr.f32.mxu0 %v306
        %1559 = vmatmul.mubr.f32.gmra.mrb[0].mxu0 %v305
        %v1560 = vpop.f32.mrb[0].mxu0
        %v1561 = vadd.f32 %v1304, %v1560
        %v1562 = vpop.f32.mrb[0].mxu0
        %v1563 = vadd.f32 %v1306, %v1562
        %1564 = vmatprep.mubr.f32.mxu0 %v310
        %1565 = vmatmul.mubr.f32.gmra.mrb[0].mxu0 %v309
        %v1566 = vpop.f32.mrb[0].mxu0
        %v1567 = vadd.f32 %v1310, %v1566
        %v1568 = vpop.f32.mrb[0].mxu0
        %v1569 = vadd.f32 %v1312, %v1568
        %1570 = vmatprep.mubr.f32.mxu0 %v314
        %1571 = vmatmul.mubr.f32.gmra.mrb[0].mxu0 %v313
        %v1572 = vpop.f32.mrb[0].mxu0
        %v1573 = vadd.f32 %v1316, %v1572
        %v1574 = vpop.f32.mrb[0].mxu0
        %v1575 = vadd.f32 %v1318, %v1574
        %1576 = vmatprep.mubr.f32.mxu0 %v318
        %1577 = vmatmul.mubr.f32.gmra.mrb[0].mxu0 %v317
        %v1578 = vpop.f32.mrb[0].mxu0
        %v1579 = vadd.f32 %v1322, %v1578
        %v1580 = vpop.f32.mrb[0].mxu0
        %v1581 = vadd.f32 %v1324, %v1580
        %1582 = vmatprep.mubr.f32.mxu0 %v322
        %1583 = vmatmul.mubr.f32.gmra.mrb[0].mxu0 %v321
        %v1584 = vpop.f32.mrb[0].mxu0
        %v1585 = vadd.f32 %v1328, %v1584
        %v1586 = vpop.f32.mrb[0].mxu0
        %v1587 = vadd.f32 %v1330, %v1586
        %1588 = vmatprep.mubr.f32.mxu0 %v326
        %1589 = vmatmul.mubr.f32.gmra.mrb[0].mxu0 %v325
        %v1590 = vpop.f32.mrb[0].mxu0
        %v1591 = vadd.f32 %v1334, %v1590
        %v1592 = vpop.f32.mrb[0].mxu0
        %v1593 = vadd.f32 %v1336, %v1592
        %1594 = vmatprep.mubr.f32.mxu0 %v330
        %1595 = vmatmul.mubr.f32.gmra.mrb[0].mxu0 %v329
        %v1596 = vpop.f32.mrb[0].mxu0
        %v1597 = vadd.f32 %v1340, %v1596
        %v1598 = vpop.f32.mrb[0].mxu0
        %v1599 = vadd.f32 %v1342, %v1598
        %1600 = vmatprep.mubr.f32.mxu0 %v334
        %1601 = vmatmul.mubr.f32.gmra.mrb[0].mxu0 %v333
        %v1602 = vpop.f32.mrb[0].mxu0
        %v1603 = vadd.f32 %v1346, %v1602
        %v1604 = vpop.f32.mrb[0].mxu0
        %v1605 = vadd.f32 %v1348, %v1604
        %1606 = vmatprep.mubr.f32.mxu0 %v338
        %1607 = vmatmul.mubr.f32.gmra.mrb[0].mxu0 %v337
        %v1608 = vpop.f32.mrb[0].mxu0
        %v1609 = vadd.f32 %v1352, %v1608
        %v1610 = vpop.f32.mrb[0].mxu0
        %v1611 = vadd.f32 %v1354, %v1610
        %1612 = vmatprep.mubr.f32.mxu0 %v342
        %1613 = vmatmul.mubr.f32.gmra.mrb[0].mxu0 %v341
        %v1614 = vpop.f32.mrb[0].mxu0
        %v1615 = vadd.f32 %v1358, %v1614
        %v1616 = vpop.f32.mrb[0].mxu0
        %v1617 = vadd.f32 %v1360, %v1616
        %1618 = vmatprep.mubr.f32.mxu0 %v346
        %1619 = vmatmul.mubr.f32.gmra.mrb[0].mxu0 %v345
        %v1620 = vpop.f32.mrb[0].mxu0
        %v1621 = vadd.f32 %v1364, %v1620
        %v1622 = vpop.f32.mrb[0].mxu0
        %v1623 = vadd.f32 %v1366, %v1622
        %1624 = vmatprep.mubr.f32.mxu0 %v350
        %1625 = vmatmul.mubr.f32.gmra.mrb[0].mxu0 %v349
        %v1626 = vpop.f32.mrb[0].mxu0
        %v1627 = vadd.f32 %v1370, %v1626
        %v1628 = vpop.f32.mrb[0].mxu0
        %v1629 = vadd.f32 %v1372, %v1628
        %1630 = vmatprep.mubr.f32.mxu0 %v354
        %1631 = vmatmul.mubr.f32.gmra.mrb[0].mxu0 %v353
        %v1632 = vpop.f32.mrb[0].mxu0
        %v1633 = vadd.f32 %v1376, %v1632
        %v1634 = vpop.f32.mrb[0].mxu0
        %v1635 = vadd.f32 %v1378, %v1634
        %1636 = vmatprep.mubr.f32.mxu0 %v358
        %1637 = vmatmul.mubr.f32.gmra.mrb[0].mxu0 %v357
        %v1638 = vpop.f32.mrb[0].mxu0
        %v1639 = vadd.f32 %v1382, %v1638
        %v1640 = vpop.f32.mrb[0].mxu0
        %v1641 = vadd.f32 %v1384, %v1640
        %1642 = vmatprep.mubr.f32.mxu0 %v362
        %1643 = vmatmul.mubr.f32.gmra.mrb[0].mxu0 %v361
        %v1644 = vpop.f32.mrb[0].mxu0
        %v1645 = vadd.f32 %v1388, %v1644
        %v1646 = vpop.f32.mrb[0].mxu0
        %v1647 = vadd.f32 %v1390, %v1646
        %1648 = vmatprep.mubr.f32.mxu0 %v366
        %1649 = vmatmul.mubr.f32.gmra.mrb[0].mxu0 %v365
        %v1650 = vpop.f32.mrb[0].mxu0
        %v1651 = vadd.f32 %v1394, %v1650
        %v1652 = vpop.f32.mrb[0].mxu0
        %v1653 = vadd.f32 %v1396, %v1652
        %1654 = vmatprep.mubr.f32.mxu0 %v370
        %1655 = vmatmul.mubr.f32.gmra.mrb[0].mxu0 %v369
        %v1656 = vpop.f32.mrb[0].mxu0
        %v1657 = vadd.f32 %v1400, %v1656
        %v1658 = vpop.f32.mrb[0].mxu0
        %v1659 = vadd.f32 %v1402, %v1658
        %1660 = vmatprep.mubr.f32.mxu0 %v374
        %1661 = vmatmul.mubr.f32.gmra.mrb[0].mxu0 %v373
        %v1662 = vpop.f32.mrb[0].mxu0
        %v1663 = vadd.f32 %v1406, %v1662
        %v1664 = vpop.f32.mrb[0].mxu0
        %v1665 = vadd.f32 %v1408, %v1664
        %1666 = vmatprep.mubr.f32.mxu0 %v378
        %1667 = vmatmul.mubr.f32.gmra.mrb[0].mxu0 %v377
        %v1668 = vpop.f32.mrb[0].mxu0
        %v1669 = vadd.f32 %v1412, %v1668
        %v1670 = vpop.f32.mrb[0].mxu0
        %v1671 = vadd.f32 %v1414, %v1670
        %1672 = vmatprep.mubr.f32.mxu0 %v382
        %1673 = vmatmul.mubr.f32.gmra.mrb[0].mxu0 %v381
        %v1674 = vpop.f32.mrb[0].mxu0
        %v1675 = vadd.f32 %v1418, %v1674
        %v1676 = vpop.f32.mrb[0].mxu0
        %v1677 = vadd.f32 %v1420, %v1676
        %1678 = vmatprep.mubr.f32.mxu0 %v386
        %1679 = vmatmul.mubr.f32.gmra.mrb[0].mxu0 %v385
        %v1680 = vpop.f32.mrb[0].mxu0
        %v1681 = vadd.f32 %v1424, %v1680
        %v1682 = vpop.f32.mrb[0].mxu0
        %v1683 = vadd.f32 %v1426, %v1682
        %1684 = vmatprep.mubr.f32.mxu0 %v390
        %1685 = vmatmul.mubr.f32.gmra.mrb[0].mxu0 %v389
        %v1686 = vpop.f32.mrb[0].mxu0
        %v1687 = vadd.f32 %v1430, %v1686
        %v1688 = vpop.f32.mrb[0].mxu0
        %v1689 = vadd.f32 %v1432, %v1688
        %1690 = vmatprep.mubr.f32.mxu0 %v394
        %1691 = vmatmul.mubr.f32.gmra.mrb[0].mxu0 %v393
        %v1692 = vpop.f32.mrb[0].mxu0
        %v1693 = vadd.f32 %v1436, %v1692
        %v1694 = vpop.f32.mrb[0].mxu0
        %v1695 = vadd.f32 %v1438, %v1694
        %1696 = vmatprep.mubr.f32.mxu0 %v398
        %1697 = vmatmul.mubr.f32.gmra.mrb[0].mxu0 %v397
        %v1698 = vpop.f32.mrb[0].mxu0
        %v1699 = vadd.f32 %v1442, %v1698
        %v1700 = vpop.f32.mrb[0].mxu0
        %v1701 = vadd.f32 %v1444, %v1700
        %1702 = vmatprep.mubr.f32.mxu0 %v402
        %1703 = vmatmul.mubr.f32.gmra.mrb[0].mxu0 %v401
        %v1704 = vpop.f32.mrb[0].mxu0
        %v1705 = vadd.f32 %v1448, %v1704
        %v1706 = vpop.f32.mrb[0].mxu0
        %v1707 = vadd.f32 %v1450, %v1706
        %1708 = vdwg.mxu0
        %v1709 = vtanh.pop %v1005
        %v1710 = vtanh.pop %v1007
        %v1711 = vtanh.pop %v1011
        %v1712 = vtanh.pop %v1013
        %v1713 = vtanh.pop %v1017
        %v1714 = vtanh.pop %v1019
        %v1715 = vtanh.pop %v1023
        %v1716 = vtanh.pop %v1025
        %v1717 = vtanh.pop %v1029
        %v1718 = vtanh.pop %v1031
        %v1719 = vtanh.pop %v1035
        %v1720 = vtanh.pop %v1037
        %v1721 = vtanh.pop %v1041
        %v1722 = vtanh.pop %v1043
        %v1723 = vtanh.pop %v1047
        %v1724 = vtanh.pop %v1049
        %v1725 = vtanh.pop %v1053
        %v1726 = vtanh.pop %v1055
        %v1727 = vtanh.pop %v1059
        %v1728 = vtanh.pop %v1061
        %v1729 = vtanh.pop %v1065
        %v1730 = vtanh.pop %v1067
        %v1731 = vtanh.pop %v1071
        %v1732 = vtanh.pop %v1073
        %v1733 = vtanh.pop %v1077
        %v1734 = vtanh.pop %v1079
        %v1735 = vtanh.pop %v1083
        %v1736 = vtanh.pop %v1085
        %v1737 = vtanh.pop %v1089
        %v1738 = vtanh.pop %v1091
        %v1739 = vtanh.pop %v1095
        %v1740 = vtanh.pop %v1097
        %v1741 = vtanh.pop %v1101
        %v1742 = vtanh.pop %v1103
        %v1743 = vtanh.pop %v1107
        %v1744 = vtanh.pop %v1109
        %v1745 = vtanh.pop %v1113
        %v1746 = vtanh.pop %v1115
        %v1747 = vtanh.pop %v1119
        %v1748 = vtanh.pop %v1121
        %v1749 = vtanh.pop %v1125
        %v1750 = vtanh.pop %v1127
        %v1751 = vtanh.pop %v1131
        %v1752 = vtanh.pop %v1133
        %v1753 = vtanh.pop %v1137
        %v1754 = vtanh.pop %v1139
        %v1755 = vtanh.pop %v1143
        %v1756 = vtanh.pop %v1145
        %v1757 = vtanh.pop %v1149
        %v1758 = vtanh.pop %v1151
        %v1759 = vtanh.pop %v1155
        %v1760 = vtanh.pop %v1157
        %v1761 = vtanh.pop %v1161
        %v1762 = vtanh.pop %v1163
        %v1763 = vtanh.pop %v1167
        %v1764 = vtanh.pop %v1169
        %v1765 = vtanh.pop %v1173
        %v1766 = vtanh.pop %v1175
        %v1767 = vtanh.pop %v1179
        %v1768 = vtanh.pop %v1181
        %v1769 = vtanh.pop %v1185
        %v1770 = vtanh.pop %v1187
        %v1771 = vtanh.pop %v1191
        %v1772 = vtanh.pop %v1193
        %v1773 = vxor.u32 %v1519, 2147483648
        %v1774 = vxor.u32 %v1521, 2147483648
        %v1775 = vxor.u32 %v1525, 2147483648
        %v1776 = vxor.u32 %v1527, 2147483648
        %v1777 = vxor.u32 %v1531, 2147483648
        %v1778 = vxor.u32 %v1533, 2147483648
        %v1779 = vxor.u32 %v1537, 2147483648
        %v1780 = vxor.u32 %v1539, 2147483648
        %v1781 = vxor.u32 %v1543, 2147483648
        %v1782 = vxor.u32 %v1545, 2147483648
        %v1783 = vxor.u32 %v1549, 2147483648
        %v1784 = vxor.u32 %v1551, 2147483648
        %v1785 = vxor.u32 %v1555, 2147483648
        %v1786 = vxor.u32 %v1557, 2147483648
        %v1787 = vxor.u32 %v1561, 2147483648
        %v1788 = vxor.u32 %v1563, 2147483648
        %v1789 = vxor.u32 %v1567, 2147483648
        %v1790 = vxor.u32 %v1569, 2147483648
        %v1791 = vxor.u32 %v1573, 2147483648
        %v1792 = vxor.u32 %v1575, 2147483648
        %v1793 = vxor.u32 %v1579, 2147483648
        %v1794 = vxor.u32 %v1581, 2147483648
        %v1795 = vxor.u32 %v1585, 2147483648
        %v1796 = vxor.u32 %v1587, 2147483648
        %v1797 = vxor.u32 %v1591, 2147483648
        %v1798 = vxor.u32 %v1593, 2147483648
        %v1799 = vxor.u32 %v1597, 2147483648
        %v1800 = vxor.u32 %v1599, 2147483648
        %v1801 = vxor.u32 %v1603, 2147483648
        %v1802 = vxor.u32 %v1605, 2147483648
        %v1803 = vxor.u32 %v1609, 2147483648
        %v1804 = vxor.u32 %v1611, 2147483648
        %v1805 = vxor.u32 %v1615, 2147483648
        %v1806 = vxor.u32 %v1617, 2147483648
        %v1807 = vxor.u32 %v1621, 2147483648
        %v1808 = vxor.u32 %v1623, 2147483648
        %v1809 = vxor.u32 %v1627, 2147483648
        %v1810 = vxor.u32 %v1629, 2147483648
        %v1811 = vxor.u32 %v1633, 2147483648
        %v1812 = vxor.u32 %v1635, 2147483648
        %v1813 = vxor.u32 %v1639, 2147483648
        %v1814 = vxor.u32 %v1641, 2147483648
        %v1815 = vxor.u32 %v1645, 2147483648
        %v1816 = vxor.u32 %v1647, 2147483648
        %v1817 = vxor.u32 %v1651, 2147483648
        %v1818 = vxor.u32 %v1653, 2147483648
        %v1819 = vxor.u32 %v1657, 2147483648
        %v1820 = vxor.u32 %v1659, 2147483648
        %v1821 = vxor.u32 %v1663, 2147483648
        %v1822 = vxor.u32 %v1665, 2147483648
        %v1823 = vxor.u32 %v1669, 2147483648
        %v1824 = vxor.u32 %v1671, 2147483648
        %v1825 = vxor.u32 %v1675, 2147483648
        %v1826 = vxor.u32 %v1677, 2147483648
        %v1827 = vxor.u32 %v1681, 2147483648
        %v1828 = vxor.u32 %v1683, 2147483648
        %v1829 = vxor.u32 %v1687, 2147483648
        %v1830 = vxor.u32 %v1689, 2147483648
        %v1831 = vxor.u32 %v1693, 2147483648
        %v1832 = vxor.u32 %v1695, 2147483648
        %v1833 = vxor.u32 %v1699, 2147483648
        %v1834 = vxor.u32 %v1701, 2147483648
        %v1835 = vxor.u32 %v1705, 2147483648
        %v1836 = vxor.u32 %v1707, 2147483648
        %v1837 = vmul.f32 %v1773, 1.442695
        %v1838 = vpow.pop %v1837
        %v1839 = vmul.f32 %v1774, 1.442695
        %v1840 = vpow.pop %v1839
        %v1841 = vmul.f32 %v1775, 1.442695
        %v1842 = vpow.pop %v1841
        %v1843 = vmul.f32 %v1776, 1.442695
        %v1844 = vpow.pop %v1843
        %v1845 = vmul.f32 %v1777, 1.442695
        %v1846 = vpow.pop %v1845
        %v1847 = vmul.f32 %v1778, 1.442695
        %v1848 = vpow.pop %v1847
        %v1849 = vmul.f32 %v1779, 1.442695
        %v1850 = vpow.pop %v1849
        %v1851 = vmul.f32 %v1780, 1.442695
        %v1852 = vpow.pop %v1851
        %v1853 = vmul.f32 %v1781, 1.442695
        %v1854 = vpow.pop %v1853
        %v1855 = vmul.f32 %v1782, 1.442695
        %v1856 = vpow.pop %v1855
        %v1857 = vmul.f32 %v1783, 1.442695
        %v1858 = vpow.pop %v1857
        %v1859 = vmul.f32 %v1784, 1.442695
        %v1860 = vpow.pop %v1859
        %v1861 = vmul.f32 %v1785, 1.442695
        %v1862 = vpow.pop %v1861
        %v1863 = vmul.f32 %v1786, 1.442695
        %v1864 = vpow.pop %v1863
        %v1865 = vmul.f32 %v1787, 1.442695
        %v1866 = vpow.pop %v1865
        %v1867 = vmul.f32 %v1788, 1.442695
        %v1868 = vpow.pop %v1867
        %v1869 = vmul.f32 %v1789, 1.442695
        %v1870 = vpow.pop %v1869
        %v1871 = vmul.f32 %v1790, 1.442695
        %v1872 = vpow.pop %v1871
        %v1873 = vmul.f32 %v1791, 1.442695
        %v1874 = vpow.pop %v1873
        %v1875 = vmul.f32 %v1792, 1.442695
        %v1876 = vpow.pop %v1875
        %v1877 = vmul.f32 %v1793, 1.442695
        %v1878 = vpow.pop %v1877
        %v1879 = vmul.f32 %v1794, 1.442695
        %v1880 = vpow.pop %v1879
        %v1881 = vmul.f32 %v1795, 1.442695
        %v1882 = vpow.pop %v1881
        %v1883 = vmul.f32 %v1796, 1.442695
        %v1884 = vpow.pop %v1883
        %v1885 = vmul.f32 %v1797, 1.442695
        %v1886 = vpow.pop %v1885
        %v1887 = vmul.f32 %v1798, 1.442695
        %v1888 = vpow.pop %v1887
        %v1889 = vmul.f32 %v1799, 1.442695
        %v1890 = vpow.pop %v1889
        %v1891 = vmul.f32 %v1800, 1.442695
        %v1892 = vpow.pop %v1891
        %v1893 = vmul.f32 %v1801, 1.442695
        %v1894 = vpow.pop %v1893
        %v1895 = vmul.f32 %v1802, 1.442695
        %v1896 = vpow.pop %v1895
        %v1897 = vmul.f32 %v1803, 1.442695
        %v1898 = vpow.pop %v1897
        %v1899 = vmul.f32 %v1804, 1.442695
        %v1900 = vpow.pop %v1899
        %v1901 = vmul.f32 %v1805, 1.442695
        %v1902 = vpow.pop %v1901
        %v1903 = vmul.f32 %v1806, 1.442695
        %v1904 = vpow.pop %v1903
        %v1905 = vmul.f32 %v1807, 1.442695
        %v1906 = vpow.pop %v1905
        %v1907 = vmul.f32 %v1808, 1.442695
        %v1908 = vpow.pop %v1907
        %v1909 = vmul.f32 %v1809, 1.442695
        %v1910 = vpow.pop %v1909
        %v1911 = vmul.f32 %v1810, 1.442695
        %v1912 = vpow.pop %v1911
        %v1913 = vmul.f32 %v1811, 1.442695
        %v1914 = vpow.pop %v1913
        %v1915 = vmul.f32 %v1812, 1.442695
        %v1916 = vpow.pop %v1915
        %v1917 = vmul.f32 %v1813, 1.442695
        %v1918 = vpow.pop %v1917
        %v1919 = vmul.f32 %v1814, 1.442695
        %v1920 = vpow.pop %v1919
        %v1921 = vmul.f32 %v1815, 1.442695
        %v1922 = vpow.pop %v1921
        %v1923 = vmul.f32 %v1816, 1.442695
        %v1924 = vpow.pop %v1923
        %v1925 = vmul.f32 %v1817, 1.442695
        %v1926 = vpow.pop %v1925
        %v1927 = vmul.f32 %v1818, 1.442695
        %v1928 = vpow.pop %v1927
        %v1929 = vmul.f32 %v1819, 1.442695
        %v1930 = vpow.pop %v1929
        %v1931 = vmul.f32 %v1820, 1.442695
        %v1932 = vpow.pop %v1931
        %v1933 = vmul.f32 %v1821, 1.442695
        %v1934 = vpow.pop %v1933
        %v1935 = vmul.f32 %v1822, 1.442695
        %v1936 = vpow.pop %v1935
        %v1937 = vmul.f32 %v1823, 1.442695
        %v1938 = vpow.pop %v1937
        %v1939 = vmul.f32 %v1824, 1.442695
        %v1940 = vpow.pop %v1939
        %v1941 = vmul.f32 %v1825, 1.442695
        %v1942 = vpow.pop %v1941
        %v1943 = vmul.f32 %v1826, 1.442695
        %v1944 = vpow.pop %v1943
        %v1945 = vmul.f32 %v1827, 1.442695
        %v1946 = vpow.pop %v1945
        %v1947 = vmul.f32 %v1828, 1.442695
        %v1948 = vpow.pop %v1947
        %v1949 = vmul.f32 %v1829, 1.442695
        %v1950 = vpow.pop %v1949
        %v1951 = vmul.f32 %v1830, 1.442695
        %v1952 = vpow.pop %v1951
        %v1953 = vmul.f32 %v1831, 1.442695
        %v1954 = vpow.pop %v1953
        %v1955 = vmul.f32 %v1832, 1.442695
        %v1956 = vpow.pop %v1955
        %v1957 = vmul.f32 %v1833, 1.442695
        %v1958 = vpow.pop %v1957
        %v1959 = vmul.f32 %v1834, 1.442695
        %v1960 = vpow.pop %v1959
        %v1961 = vmul.f32 %v1835, 1.442695
        %v1962 = vpow.pop %v1961
        %v1963 = vmul.f32 %v1836, 1.442695
        %v1964 = vpow.pop %v1963
        %v1965 = vadd.f32 %v1838, 1.0
        %v1966 = vadd.f32 %v1840, 1.0
        %v1967 = vadd.f32 %v1842, 1.0
        %v1968 = vadd.f32 %v1844, 1.0
        %v1969 = vadd.f32 %v1846, 1.0
        %v1970 = vadd.f32 %v1848, 1.0
        %v1971 = vadd.f32 %v1850, 1.0
        %v1972 = vadd.f32 %v1852, 1.0
        %v1973 = vadd.f32 %v1854, 1.0
        %v1974 = vadd.f32 %v1856, 1.0
        %v1975 = vadd.f32 %v1858, 1.0
        %v1976 = vadd.f32 %v1860, 1.0
        %v1977 = vadd.f32 %v1862, 1.0
        %v1978 = vadd.f32 %v1864, 1.0
        %v1979 = vadd.f32 %v1866, 1.0
        %v1980 = vadd.f32 %v1868, 1.0
        %v1981 = vadd.f32 %v1870, 1.0
        %v1982 = vadd.f32 %v1872, 1.0
        %v1983 = vadd.f32 %v1874, 1.0
        %v1984 = vadd.f32 %v1876, 1.0
        %v1985 = vadd.f32 %v1878, 1.0
        %v1986 = vadd.f32 %v1880, 1.0
        %v1987 = vadd.f32 %v1882, 1.0
        %v1988 = vadd.f32 %v1884, 1.0
        %v1989 = vadd.f32 %v1886, 1.0
        %v1990 = vadd.f32 %v1888, 1.0
        %v1991 = vadd.f32 %v1890, 1.0
        %v1992 = vadd.f32 %v1892, 1.0
        %v1993 = vadd.f32 %v1894, 1.0
        %v1994 = vadd.f32 %v1896, 1.0
        %v1995 = vadd.f32 %v1898, 1.0
        %v1996 = vadd.f32 %v1900, 1.0
        %v1997 = vadd.f32 %v1902, 1.0
        %v1998 = vadd.f32 %v1904, 1.0
        %v1999 = vadd.f32 %v1906, 1.0
        %v2000 = vadd.f32 %v1908, 1.0
        %v2001 = vadd.f32 %v1910, 1.0
        %v2002 = vadd.f32 %v1912, 1.0
        %v2003 = vadd.f32 %v1914, 1.0
        %v2004 = vadd.f32 %v1916, 1.0
        %v2005 = vadd.f32 %v1918, 1.0
        %v2006 = vadd.f32 %v1920, 1.0
        %v2007 = vadd.f32 %v1922, 1.0
        %v2008 = vadd.f32 %v1924, 1.0
        %v2009 = vadd.f32 %v1926, 1.0
        %v2010 = vadd.f32 %v1928, 1.0
        %v2011 = vadd.f32 %v1930, 1.0
        %v2012 = vadd.f32 %v1932, 1.0
        %v2013 = vadd.f32 %v1934, 1.0
        %v2014 = vadd.f32 %v1936, 1.0
        %v2015 = vadd.f32 %v1938, 1.0
        %v2016 = vadd.f32 %v1940, 1.0
        %v2017 = vadd.f32 %v1942, 1.0
        %v2018 = vadd.f32 %v1944, 1.0
        %v2019 = vadd.f32 %v1946, 1.0
        %v2020 = vadd.f32 %v1948, 1.0
        %v2021 = vadd.f32 %v1950, 1.0
        %v2022 = vadd.f32 %v1952, 1.0
        %v2023 = vadd.f32 %v1954, 1.0
        %v2024 = vadd.f32 %v1956, 1.0
        %v2025 = vadd.f32 %v1958, 1.0
        %v2026 = vadd.f32 %v1960, 1.0
        %v2027 = vadd.f32 %v1962, 1.0
        %v2028 = vadd.f32 %v1964, 1.0
        %v2029 = vrcp.pop %v1965
        %v2030 = vmul.f32 1.0, %v2029
        %v2031 = vrcp.pop %v1966
        %v2032 = vmul.f32 1.0, %v2031
        %v2033 = vrcp.pop %v1967
        %v2034 = vmul.f32 1.0, %v2033
        %v2035 = vrcp.pop %v1968
        %v2036 = vmul.f32 1.0, %v2035
        %v2037 = vrcp.pop %v1969
        %v2038 = vmul.f32 1.0, %v2037
        %v2039 = vrcp.pop %v1970
        %v2040 = vmul.f32 1.0, %v2039
        %v2041 = vrcp.pop %v1971
        %v2042 = vmul.f32 1.0, %v2041
        %v2043 = vrcp.pop %v1972
        %v2044 = vmul.f32 1.0, %v2043
        %v2045 = vrcp.pop %v1973
        %v2046 = vmul.f32 1.0, %v2045
        %v2047 = vrcp.pop %v1974
        %v2048 = vmul.f32 1.0, %v2047
        %v2049 = vrcp.pop %v1975
        %v2050 = vmul.f32 1.0, %v2049
        %v2051 = vrcp.pop %v1976
        %v2052 = vmul.f32 1.0, %v2051
        %v2053 = vrcp.pop %v1977
        %v2054 = vmul.f32 1.0, %v2053
        %v2055 = vrcp.pop %v1978
        %v2056 = vmul.f32 1.0, %v2055
        %v2057 = vrcp.pop %v1979
        %v2058 = vmul.f32 1.0, %v2057
        %v2059 = vrcp.pop %v1980
        %v2060 = vmul.f32 1.0, %v2059
        %v2061 = vrcp.pop %v1981
        %v2062 = vmul.f32 1.0, %v2061
        %v2063 = vrcp.pop %v1982
        %v2064 = vmul.f32 1.0, %v2063
        %v2065 = vrcp.pop %v1983
        %v2066 = vmul.f32 1.0, %v2065
        %v2067 = vrcp.pop %v1984
        %v2068 = vmul.f32 1.0, %v2067
        %v2069 = vrcp.pop %v1985
        %v2070 = vmul.f32 1.0, %v2069
        %v2071 = vrcp.pop %v1986
        %v2072 = vmul.f32 1.0, %v2071
        %v2073 = vrcp.pop %v1987
        %v2074 = vmul.f32 1.0, %v2073
        %v2075 = vrcp.pop %v1988
        %v2076 = vmul.f32 1.0, %v2075
        %v2077 = vrcp.pop %v1989
        %v2078 = vmul.f32 1.0, %v2077
        %v2079 = vrcp.pop %v1990
        %v2080 = vmul.f32 1.0, %v2079
        %v2081 = vrcp.pop %v1991
        %v2082 = vmul.f32 1.0, %v2081
        %v2083 = vrcp.pop %v1992
        %v2084 = vmul.f32 1.0, %v2083
        %v2085 = vrcp.pop %v1993
        %v2086 = vmul.f32 1.0, %v2085
        %v2087 = vrcp.pop %v1994
        %v2088 = vmul.f32 1.0, %v2087
        %v2089 = vrcp.pop %v1995
        %v2090 = vmul.f32 1.0, %v2089
        %v2091 = vrcp.pop %v1996
        %v2092 = vmul.f32 1.0, %v2091
        %v2093 = vrcp.pop %v1997
        %v2094 = vmul.f32 1.0, %v2093
        %v2095 = vrcp.pop %v1998
        %v2096 = vmul.f32 1.0, %v2095
        %v2097 = vrcp.pop %v1999
        %v2098 = vmul.f32 1.0, %v2097
        %v2099 = vrcp.pop %v2000
        %v2100 = vmul.f32 1.0, %v2099
        %v2101 = vrcp.pop %v2001
        %v2102 = vmul.f32 1.0, %v2101
        %v2103 = vrcp.pop %v2002
        %v2104 = vmul.f32 1.0, %v2103
        %v2105 = vrcp.pop %v2003
        %v2106 = vmul.f32 1.0, %v2105
        %v2107 = vrcp.pop %v2004
        %v2108 = vmul.f32 1.0, %v2107
        %v2109 = vrcp.pop %v2005
        %v2110 = vmul.f32 1.0, %v2109
        %v2111 = vrcp.pop %v2006
        %v2112 = vmul.f32 1.0, %v2111
        %v2113 = vrcp.pop %v2007
        %v2114 = vmul.f32 1.0, %v2113
        %v2115 = vrcp.pop %v2008
        %v2116 = vmul.f32 1.0, %v2115
        %v2117 = vrcp.pop %v2009
        %v2118 = vmul.f32 1.0, %v2117
        %v2119 = vrcp.pop %v2010
        %v2120 = vmul.f32 1.0, %v2119
        %v2121 = vrcp.pop %v2011
        %v2122 = vmul.f32 1.0, %v2121
        %v2123 = vrcp.pop %v2012
        %v2124 = vmul.f32 1.0, %v2123
        %v2125 = vrcp.pop %v2013
        %v2126 = vmul.f32 1.0, %v2125
        %v2127 = vrcp.pop %v2014
        %v2128 = vmul.f32 1.0, %v2127
        %v2129 = vrcp.pop %v2015
        %v2130 = vmul.f32 1.0, %v2129
        %v2131 = vrcp.pop %v2016
        %v2132 = vmul.f32 1.0, %v2131
        %v2133 = vrcp.pop %v2017
        %v2134 = vmul.f32 1.0, %v2133
        %v2135 = vrcp.pop %v2018
        %v2136 = vmul.f32 1.0, %v2135
        %v2137 = vrcp.pop %v2019
        %v2138 = vmul.f32 1.0, %v2137
        %v2139 = vrcp.pop %v2020
        %v2140 = vmul.f32 1.0, %v2139
        %v2141 = vrcp.pop %v2021
        %v2142 = vmul.f32 1.0, %v2141
        %v2143 = vrcp.pop %v2022
        %v2144 = vmul.f32 1.0, %v2143
        %v2145 = vrcp.pop %v2023
        %v2146 = vmul.f32 1.0, %v2145
        %v2147 = vrcp.pop %v2024
        %v2148 = vmul.f32 1.0, %v2147
        %v2149 = vrcp.pop %v2025
        %v2150 = vmul.f32 1.0, %v2149
        %v2151 = vrcp.pop %v2026
        %v2152 = vmul.f32 1.0, %v2151
        %v2153 = vrcp.pop %v2027
        %v2154 = vmul.f32 1.0, %v2153
        %v2155 = vrcp.pop %v2028
        %v2156 = vmul.f32 1.0, %v2155
        %v2157 = vmul.f32 %v1709, %v2030
        %v2158 = vmul.f32 %v1710, %v2032
        %v2159 = vmul.f32 %v1711, %v2034
        %v2160 = vmul.f32 %v1712, %v2036
        %v2161 = vmul.f32 %v1713, %v2038
        %v2162 = vmul.f32 %v1714, %v2040
        %v2163 = vmul.f32 %v1715, %v2042
        %v2164 = vmul.f32 %v1716, %v2044
        %v2165 = vmul.f32 %v1717, %v2046
        %v2166 = vmul.f32 %v1718, %v2048
        %v2167 = vmul.f32 %v1719, %v2050
        %v2168 = vmul.f32 %v1720, %v2052
        %v2169 = vmul.f32 %v1721, %v2054
        %v2170 = vmul.f32 %v1722, %v2056
        %v2171 = vmul.f32 %v1723, %v2058
        %v2172 = vmul.f32 %v1724, %v2060
        %v2173 = vmul.f32 %v1725, %v2062
        %v2174 = vmul.f32 %v1726, %v2064
        %v2175 = vmul.f32 %v1727, %v2066
        %v2176 = vmul.f32 %v1728, %v2068
        %v2177 = vmul.f32 %v1729, %v2070
        %v2178 = vmul.f32 %v1730, %v2072
        %v2179 = vmul.f32 %v1731, %v2074
        %v2180 = vmul.f32 %v1732, %v2076
        %v2181 = vmul.f32 %v1733, %v2078
        %v2182 = vmul.f32 %v1734, %v2080
        %v2183 = vmul.f32 %v1735, %v2082
        %v2184 = vmul.f32 %v1736, %v2084
        %v2185 = vmul.f32 %v1737, %v2086
        %v2186 = vmul.f32 %v1738, %v2088
        %v2187 = vmul.f32 %v1739, %v2090
        %v2188 = vmul.f32 %v1740, %v2092
        %v2189 = vmul.f32 %v1741, %v2094
        %v2190 = vmul.f32 %v1742, %v2096
        %v2191 = vmul.f32 %v1743, %v2098
        %v2192 = vmul.f32 %v1744, %v2100
        %v2193 = vmul.f32 %v1745, %v2102
        %v2194 = vmul.f32 %v1746, %v2104
        %v2195 = vmul.f32 %v1747, %v2106
        %v2196 = vmul.f32 %v1748, %v2108
        %v2197 = vmul.f32 %v1749, %v2110
        %v2198 = vmul.f32 %v1750, %v2112
        %v2199 = vmul.f32 %v1751, %v2114
        %v2200 = vmul.f32 %v1752, %v2116
        %v2201 = vmul.f32 %v1753, %v2118
        %v2202 = vmul.f32 %v1754, %v2120
        %v2203 = vmul.f32 %v1755, %v2122
        %v2204 = vmul.f32 %v1756, %v2124
        %v2205 = vmul.f32 %v1757, %v2126
        %v2206 = vmul.f32 %v1758, %v2128
        %v2207 = vmul.f32 %v1759, %v2130
        %v2208 = vmul.f32 %v1760, %v2132
        %v2209 = vmul.f32 %v1761, %v2134
        %v2210 = vmul.f32 %v1762, %v2136
        %v2211 = vmul.f32 %v1763, %v2138
        %v2212 = vmul.f32 %v1764, %v2140
        %v2213 = vmul.f32 %v1765, %v2142
        %v2214 = vmul.f32 %v1766, %v2144
        %v2215 = vmul.f32 %v1767, %v2146
        %v2216 = vmul.f32 %v1768, %v2148
        %v2217 = vmul.f32 %v1769, %v2150
        %v2218 = vmul.f32 %v1770, %v2152
        %v2219 = vmul.f32 %v1771, %v2154
        %v2220 = vmul.f32 %v1772, %v2156
        %v2221 = vld [vmem:[#allocation7] sm:$0xff]
        %v2222 = vld [vmem:[#allocation7 + $0x8] sm:$0xff]
        %v2223 = vld [vmem:[#allocation7 + $0x10] sm:$0xff]
        %v2224 = vld [vmem:[#allocation7 + $0x18] sm:$0xff]
        %v2225 = vld [vmem:[#allocation7 + $0x20] sm:$0xff]
        %v2226 = vld [vmem:[#allocation7 + $0x28] sm:$0xff]
        %v2227 = vld [vmem:[#allocation7 + $0x30] sm:$0xff]
        %v2228 = vld [vmem:[#allocation7 + $0x38] sm:$0xff]
        %v2229 = vld [vmem:[#allocation7 + $0x40] sm:$0xff]
        %v2230 = vld [vmem:[#allocation7 + $0x48] sm:$0xff]
        %v2231 = vld [vmem:[#allocation7 + $0x50] sm:$0xff]
        %v2232 = vld [vmem:[#allocation7 + $0x58] sm:$0xff]
        %v2233 = vld [vmem:[#allocation7 + $0x60] sm:$0xff]
        %v2234 = vld [vmem:[#allocation7 + $0x68] sm:$0xff]
        %v2235 = vld [vmem:[#allocation7 + $0x70] sm:$0xff]
        %v2236 = vld [vmem:[#allocation7 + $0x78] sm:$0xff]
        %v2237 = vld [vmem:[#allocation7 + $0x80] sm:$0xff]
        %v2238 = vld [vmem:[#allocation7 + $0x88] sm:$0xff]
        %v2239 = vld [vmem:[#allocation7 + $0x90] sm:$0xff]
        %v2240 = vld [vmem:[#allocation7 + $0x98] sm:$0xff]
        %v2241 = vld [vmem:[#allocation7 + $0xa0] sm:$0xff]
        %v2242 = vld [vmem:[#allocation7 + $0xa8] sm:$0xff]
        %v2243 = vld [vmem:[#allocation7 + $0xb0] sm:$0xff]
        %v2244 = vld [vmem:[#allocation7 + $0xb8] sm:$0xff]
        %v2245 = vld [vmem:[#allocation7 + $0xc0] sm:$0xff]
        %v2246 = vld [vmem:[#allocation7 + $0xc8] sm:$0xff]
        %v2247 = vld [vmem:[#allocation7 + $0xd0] sm:$0xff]
        %v2248 = vld [vmem:[#allocation7 + $0xd8] sm:$0xff]
        %v2249 = vld [vmem:[#allocation7 + $0xe0] sm:$0xff]
        %v2250 = vld [vmem:[#allocation7 + $0xe8] sm:$0xff]
        %v2251 = vld [vmem:[#allocation7 + $0xf0] sm:$0xff]
        %v2252 = vld [vmem:[#allocation7 + $0xf8] sm:$0xff]
        %v2253 = vld [vmem:[%s4] sm:$0x1]
        %v2255 = vlaneseq
        %v2256 = vshrl.u32 %v2255, 7
        %v2257 = vsub.s32 0, %v2256
        %v2258 = vrot.slane %v2253, %v2257
        %2260 = vmatprep.subr.mxu0 0.0
        %2261 = vmatpush1.msra.mxu0 %v2221
        %2262 = vmatprep.subr.mxu0 0.0
        %2263 = vmatpush1.msra.mxu0 %v2222
        %2264 = vmatprep.subr.mxu0 0.0
        %2265 = vmatpush1.msra.mxu0 %v2223
        %2266 = vmatprep.subr.mxu0 0.0
        %2267 = vmatpush1.msra.mxu0 %v2224
        %2268 = vmatprep.subr.mxu0 0.0
        %2269 = vmatpush1.msra.mxu0 %v2225
        %2270 = vmatprep.subr.mxu0 0.0
        %2271 = vmatpush1.msra.mxu0 %v2226
        %2272 = vmatprep.subr.mxu0 0.0
        %2273 = vmatpush1.msra.mxu0 %v2227
        %2274 = vmatprep.subr.mxu0 0.0
        %2275 = vmatpush1.msra.mxu0 %v2228
        %2276 = vmatprep.subr.mxu0 0.0
        %2277 = vmatpush1.msra.mxu0 %v2229
        %2278 = vmatprep.subr.mxu0 0.0
        %2279 = vmatpush1.msra.mxu0 %v2230
        %2280 = vmatprep.subr.mxu0 0.0
        %2281 = vmatpush1.msra.mxu0 %v2231
        %2282 = vmatprep.subr.mxu0 0.0
        %2283 = vmatpush1.msra.mxu0 %v2232
        %2284 = vmatprep.subr.mxu0 0.0
        %2285 = vmatpush1.msra.mxu0 %v2233
        %2286 = vmatprep.subr.mxu0 0.0
        %2287 = vmatpush1.msra.mxu0 %v2234
        %2288 = vmatprep.subr.mxu0 0.0
        %2289 = vmatpush1.msra.mxu0 %v2235
        %2290 = vmatprep.subr.mxu0 0.0
        %2291 = vmatpush1.msra.mxu0 %v2236
        %2292 = vmatprep.subr.mxu0 0.0
        %2293 = vmatpush1.msra.mxu0 %v2237
        %2294 = vmatprep.subr.mxu0 0.0
        %2295 = vmatpush1.msra.mxu0 %v2238
        %2296 = vmatprep.subr.mxu0 0.0
        %2297 = vmatpush1.msra.mxu0 %v2239
        %2298 = vmatprep.subr.mxu0 0.0
        %2299 = vmatpush1.msra.mxu0 %v2240
        %2300 = vmatprep.subr.mxu0 0.0
        %2301 = vmatpush1.msra.mxu0 %v2241
        %2302 = vmatprep.subr.mxu0 0.0
        %2303 = vmatpush1.msra.mxu0 %v2242
        %2304 = vmatprep.subr.mxu0 0.0
        %2305 = vmatpush1.msra.mxu0 %v2243
        %2306 = vmatprep.subr.mxu0 0.0
        %2307 = vmatpush1.msra.mxu0 %v2244
        %2308 = vmatprep.subr.mxu0 0.0
        %2309 = vmatpush1.msra.mxu0 %v2245
        %2310 = vmatprep.subr.mxu0 0.0
        %2311 = vmatpush1.msra.mxu0 %v2246
        %2312 = vmatprep.subr.mxu0 0.0
        %2313 = vmatpush1.msra.mxu0 %v2247
        %2314 = vmatprep.subr.mxu0 0.0
        %2315 = vmatpush1.msra.mxu0 %v2248
        %2316 = vmatprep.subr.mxu0 0.0
        %2317 = vmatpush1.msra.mxu0 %v2249
        %2318 = vmatprep.subr.mxu0 0.0
        %2319 = vmatpush1.msra.mxu0 %v2250
        %2320 = vmatprep.subr.mxu0 0.0
        %2321 = vmatpush1.msra.mxu0 %v2251
        %2322 = vmatprep.subr.mxu0 0.0
        %2323 = vmatpush1.msra.mxu0 %v2252
        %2324 = vmatprep.mubr.f32.mxu0 %v2158
        %2325 = vmatmul.mubr.f32.gmra.mrb[0].mxu0 %v2157
        %v2326 = vpop.f32.mrb[0].mxu0
        %v2327 = vadd.f32 %v2258, %v2326
        %v2328 = vpop.f32.mrb[0].mxu0
        %2329 = vmatprep.mubr.f32.mxu0 %v2160
        %2330 = vmatmul.mubr.f32.gmra.mrb[0].mxu0 %v2159
        %v2331 = vpop.f32.mrb[0].mxu0
        %v2332 = vadd.f32 %v2258, %v2331
        %v2333 = vpop.f32.mrb[0].mxu0
        %2334 = vmatprep.mubr.f32.mxu0 %v2162
        %2335 = vmatmul.mubr.f32.gmra.mrb[0].mxu0 %v2161
        %v2336 = vpop.f32.mrb[0].mxu0
        %v2337 = vadd.f32 %v2258, %v2336
        %v2338 = vpop.f32.mrb[0].mxu0
        %2339 = vmatprep.mubr.f32.mxu0 %v2164
        %2340 = vmatmul.mubr.f32.gmra.mrb[0].mxu0 %v2163
        %v2341 = vpop.f32.mrb[0].mxu0
        %v2342 = vadd.f32 %v2258, %v2341
        %v2343 = vpop.f32.mrb[0].mxu0
        %2344 = vmatprep.mubr.f32.mxu0 %v2166
        %2345 = vmatmul.mubr.f32.gmra.mrb[0].mxu0 %v2165
        %v2346 = vpop.f32.mrb[0].mxu0
        %v2347 = vadd.f32 %v2258, %v2346
        %v2348 = vpop.f32.mrb[0].mxu0
        %2349 = vmatprep.mubr.f32.mxu0 %v2168
        %2350 = vmatmul.mubr.f32.gmra.mrb[0].mxu0 %v2167
        %v2351 = vpop.f32.mrb[0].mxu0
        %v2352 = vadd.f32 %v2258, %v2351
        %v2353 = vpop.f32.mrb[0].mxu0
        %2354 = vmatprep.mubr.f32.mxu0 %v2170
        %2355 = vmatmul.mubr.f32.gmra.mrb[0].mxu0 %v2169
        %v2356 = vpop.f32.mrb[0].mxu0
        %v2357 = vadd.f32 %v2258, %v2356
        %v2358 = vpop.f32.mrb[0].mxu0
        %2359 = vmatprep.mubr.f32.mxu0 %v2172
        %2360 = vmatmul.mubr.f32.gmra.mrb[0].mxu0 %v2171
        %v2361 = vpop.f32.mrb[0].mxu0
        %v2362 = vadd.f32 %v2258, %v2361
        %v2363 = vpop.f32.mrb[0].mxu0
        %2364 = vmatprep.mubr.f32.mxu0 %v2174
        %2365 = vmatmul.mubr.f32.gmra.mrb[0].mxu0 %v2173
        %v2366 = vpop.f32.mrb[0].mxu0
        %v2367 = vadd.f32 %v2258, %v2366
        %v2368 = vpop.f32.mrb[0].mxu0
        %2369 = vmatprep.mubr.f32.mxu0 %v2176
        %2370 = vmatmul.mubr.f32.gmra.mrb[0].mxu0 %v2175
        %v2371 = vpop.f32.mrb[0].mxu0
        %v2372 = vadd.f32 %v2258, %v2371
        %v2373 = vpop.f32.mrb[0].mxu0
        %2374 = vmatprep.mubr.f32.mxu0 %v2178
        %2375 = vmatmul.mubr.f32.gmra.mrb[0].mxu0 %v2177
        %v2376 = vpop.f32.mrb[0].mxu0
        %v2377 = vadd.f32 %v2258, %v2376
        %v2378 = vpop.f32.mrb[0].mxu0
        %2379 = vmatprep.mubr.f32.mxu0 %v2180
        %2380 = vmatmul.mubr.f32.gmra.mrb[0].mxu0 %v2179
        %v2381 = vpop.f32.mrb[0].mxu0
        %v2382 = vadd.f32 %v2258, %v2381
        %v2383 = vpop.f32.mrb[0].mxu0
        %2384 = vmatprep.mubr.f32.mxu0 %v2182
        %2385 = vmatmul.mubr.f32.gmra.mrb[0].mxu0 %v2181
        %v2386 = vpop.f32.mrb[0].mxu0
        %v2387 = vadd.f32 %v2258, %v2386
        %v2388 = vpop.f32.mrb[0].mxu0
        %2389 = vmatprep.mubr.f32.mxu0 %v2184
        %2390 = vmatmul.mubr.f32.gmra.mrb[0].mxu0 %v2183
        %v2391 = vpop.f32.mrb[0].mxu0
        %v2392 = vadd.f32 %v2258, %v2391
        %v2393 = vpop.f32.mrb[0].mxu0
        %2394 = vmatprep.mubr.f32.mxu0 %v2186
        %2395 = vmatmul.mubr.f32.gmra.mrb[0].mxu0 %v2185
        %v2396 = vpop.f32.mrb[0].mxu0
        %v2397 = vadd.f32 %v2258, %v2396
        %v2398 = vpop.f32.mrb[0].mxu0
        %2399 = vmatprep.mubr.f32.mxu0 %v2188
        %2400 = vmatmul.mubr.f32.gmra.mrb[0].mxu0 %v2187
        %v2401 = vpop.f32.mrb[0].mxu0
        %v2402 = vadd.f32 %v2258, %v2401
        %v2403 = vpop.f32.mrb[0].mxu0
        %2404 = vmatprep.mubr.f32.mxu0 %v2190
        %2405 = vmatmul.mubr.f32.gmra.mrb[0].mxu0 %v2189
        %v2406 = vpop.f32.mrb[0].mxu0
        %v2407 = vadd.f32 %v2258, %v2406
        %v2408 = vpop.f32.mrb[0].mxu0
        %2409 = vmatprep.mubr.f32.mxu0 %v2192
        %2410 = vmatmul.mubr.f32.gmra.mrb[0].mxu0 %v2191
        %v2411 = vpop.f32.mrb[0].mxu0
        %v2412 = vadd.f32 %v2258, %v2411
        %v2413 = vpop.f32.mrb[0].mxu0
        %2414 = vmatprep.mubr.f32.mxu0 %v2194
        %2415 = vmatmul.mubr.f32.gmra.mrb[0].mxu0 %v2193
        %v2416 = vpop.f32.mrb[0].mxu0
        %v2417 = vadd.f32 %v2258, %v2416
        %v2418 = vpop.f32.mrb[0].mxu0
        %2419 = vmatprep.mubr.f32.mxu0 %v2196
        %2420 = vmatmul.mubr.f32.gmra.mrb[0].mxu0 %v2195
        %v2421 = vpop.f32.mrb[0].mxu0
        %v2422 = vadd.f32 %v2258, %v2421
        %v2423 = vpop.f32.mrb[0].mxu0
        %2424 = vmatprep.mubr.f32.mxu0 %v2198
        %2425 = vmatmul.mubr.f32.gmra.mrb[0].mxu0 %v2197
        %v2426 = vpop.f32.mrb[0].mxu0
        %v2427 = vadd.f32 %v2258, %v2426
        %v2428 = vpop.f32.mrb[0].mxu0
        %2429 = vmatprep.mubr.f32.mxu0 %v2200
        %2430 = vmatmul.mubr.f32.gmra.mrb[0].mxu0 %v2199
        %v2431 = vpop.f32.mrb[0].mxu0
        %v2432 = vadd.f32 %v2258, %v2431
        %v2433 = vpop.f32.mrb[0].mxu0
        %2434 = vmatprep.mubr.f32.mxu0 %v2202
        %2435 = vmatmul.mubr.f32.gmra.mrb[0].mxu0 %v2201
        %v2436 = vpop.f32.mrb[0].mxu0
        %v2437 = vadd.f32 %v2258, %v2436
        %v2438 = vpop.f32.mrb[0].mxu0
        %2439 = vmatprep.mubr.f32.mxu0 %v2204
        %2440 = vmatmul.mubr.f32.gmra.mrb[0].mxu0 %v2203
        %v2441 = vpop.f32.mrb[0].mxu0
        %v2442 = vadd.f32 %v2258, %v2441
        %v2443 = vpop.f32.mrb[0].mxu0
        %2444 = vmatprep.mubr.f32.mxu0 %v2206
        %2445 = vmatmul.mubr.f32.gmra.mrb[0].mxu0 %v2205
        %v2446 = vpop.f32.mrb[0].mxu0
        %v2447 = vadd.f32 %v2258, %v2446
        %v2448 = vpop.f32.mrb[0].mxu0
        %2449 = vmatprep.mubr.f32.mxu0 %v2208
        %2450 = vmatmul.mubr.f32.gmra.mrb[0].mxu0 %v2207
        %v2451 = vpop.f32.mrb[0].mxu0
        %v2452 = vadd.f32 %v2258, %v2451
        %v2453 = vpop.f32.mrb[0].mxu0
        %2454 = vmatprep.mubr.f32.mxu0 %v2210
        %2455 = vmatmul.mubr.f32.gmra.mrb[0].mxu0 %v2209
        %v2456 = vpop.f32.mrb[0].mxu0
        %v2457 = vadd.f32 %v2258, %v2456
        %v2458 = vpop.f32.mrb[0].mxu0
        %2459 = vmatprep.mubr.f32.mxu0 %v2212
        %2460 = vmatmul.mubr.f32.gmra.mrb[0].mxu0 %v2211
        %v2461 = vpop.f32.mrb[0].mxu0
        %v2462 = vadd.f32 %v2258, %v2461
        %v2463 = vpop.f32.mrb[0].mxu0
        %2464 = vmatprep.mubr.f32.mxu0 %v2214
        %2465 = vmatmul.mubr.f32.gmra.mrb[0].mxu0 %v2213
        %v2466 = vpop.f32.mrb[0].mxu0
        %v2467 = vadd.f32 %v2258, %v2466
        %v2468 = vpop.f32.mrb[0].mxu0
        %2469 = vmatprep.mubr.f32.mxu0 %v2216
        %2470 = vmatmul.mubr.f32.gmra.mrb[0].mxu0 %v2215
        %v2471 = vpop.f32.mrb[0].mxu0
        %v2472 = vadd.f32 %v2258, %v2471
        %v2473 = vpop.f32.mrb[0].mxu0
        %2474 = vmatprep.mubr.f32.mxu0 %v2218
        %2475 = vmatmul.mubr.f32.gmra.mrb[0].mxu0 %v2217
        %v2476 = vpop.f32.mrb[0].mxu0
        %v2477 = vadd.f32 %v2258, %v2476
        %v2478 = vpop.f32.mrb[0].mxu0
        %2479 = vmatprep.mubr.f32.mxu0 %v2220
        %2480 = vmatmul.mubr.f32.gmra.mrb[0].mxu0 %v2219
        %v2481 = vpop.f32.mrb[0].mxu0
        %v2482 = vadd.f32 %v2258, %v2481
        %v2483 = vpop.f32.mrb[0].mxu0
        %2484 = vdwg.mxu0
        %2485 = vst [vmem:[%s272] sm:$0xff] %v2327
        %2486 = vst [vmem:[%s272 + $0x8] sm:$0xff] %v2332
        %2487 = vst [vmem:[%s272 + $0x10] sm:$0xff] %v2337
        %2488 = vst [vmem:[%s272 + $0x18] sm:$0xff] %v2342
        %2489 = vst [vmem:[%s272 + $0x20] sm:$0xff] %v2347
        %2490 = vst [vmem:[%s272 + $0x28] sm:$0xff] %v2352
        %2491 = vst [vmem:[%s272 + $0x30] sm:$0xff] %v2357
        %2492 = vst [vmem:[%s272 + $0x38] sm:$0xff] %v2362
        %2493 = vst [vmem:[%s272 + $0x40] sm:$0xff] %v2367
        %2494 = vst [vmem:[%s272 + $0x48] sm:$0xff] %v2372
        %2495 = vst [vmem:[%s272 + $0x50] sm:$0xff] %v2377
        %2496 = vst [vmem:[%s272 + $0x58] sm:$0xff] %v2382
        %2497 = vst [vmem:[%s272 + $0x60] sm:$0xff] %v2387
        %2498 = vst [vmem:[%s272 + $0x68] sm:$0xff] %v2392
        %2499 = vst [vmem:[%s272 + $0x70] sm:$0xff] %v2397
        %2500 = vst [vmem:[%s272 + $0x78] sm:$0xff] %v2402
        %2501 = vst [vmem:[%s272 + $0x80] sm:$0xff] %v2407
        %2502 = vst [vmem:[%s272 + $0x88] sm:$0xff] %v2412
        %2503 = vst [vmem:[%s272 + $0x90] sm:$0xff] %v2417
        %2504 = vst [vmem:[%s272 + $0x98] sm:$0xff] %v2422
        %2505 = vst [vmem:[%s272 + $0xa0] sm:$0xff] %v2427
        %2506 = vst [vmem:[%s272 + $0xa8] sm:$0xff] %v2432
        %2507 = vst [vmem:[%s272 + $0xb0] sm:$0xff] %v2437
        %2508 = vst [vmem:[%s272 + $0xb8] sm:$0xff] %v2442
        %2509 = vst [vmem:[%s272 + $0xc0] sm:$0xff] %v2447
        %2510 = vst [vmem:[%s272 + $0xc8] sm:$0xff] %v2452
        %2511 = vst [vmem:[%s272 + $0xd0] sm:$0xff] %v2457
        %2512 = vst [vmem:[%s272 + $0xd8] sm:$0xff] %v2462
        %2513 = vst [vmem:[%s272 + $0xe0] sm:$0xff] %v2467
        %2514 = vst [vmem:[%s272 + $0xe8] sm:$0xff] %v2472
        %2515 = vst [vmem:[%s272 + $0xf0] sm:$0xff] %v2477
        %2516 = vst [vmem:[%s272 + $0xf8] sm:$0xff] %v2482
        %s2517 = sand.u32 %s141, 1
        %s2518 = scalar_lea.sflag [#allocation4], %s2517
        %s2519 = sand.u32 %s141, 1
        %s2520 = smul.addr %s2519, 256
        %s2521 = scalar_lea.vmem [#allocation8], %s2520
        // Predicated region
        $region53: #{tpu_custom_call.1} parent=39 // pred_check
          %p2522 = pneg %p151
        $region54: #{tpu_custom_call.1} parent=39 // pred_check_branch
          %2524 = sbr.rel (%p2522) target = $region56
        $region55: #{tpu_custom_call.1} parent=39 // pred_region
          %s2525 = smul.u32 32, %s23
          %s2527 = ssub.s32 4096, 4096
          %2528 = vsyncadd %s2518, %s2527
          %s2529 = smul.addr %s2525, 128
          %s2530 = scalar_lea.hbm %s5, %s2529
          %s2531 = sshll.u32 %s2521, 4
          %s2532 = int_to_ptr.vmem [resolvable:$true] %s2531
          %2537 = dma.vmem_to_hbm [thread:$0]  %s2532, 4096, %s2530, %s2518, 128, 128, 8
        $region56: #{tpu_custom_call.1} parent=39 // pred_fallthru
          _
      $region40: #{tpu_custom_call.1} parent=5 // pred_fallthru
        _
      %p2538 = scmp.le.s32.totalorder 2, %s18
      // Predicated region
      $region57: #{tpu_custom_call.1} parent=5 // pred_check
        %p2539 = pneg %p2538
      $region58: #{tpu_custom_call.1} parent=5 // pred_check_branch
        %2541 = sbr.rel (%p2539) target = $region60
      $region59: #{tpu_custom_call.1} parent=5 // pred_region
        %s2542 = ssub.s32 %s18, 2
        // Predicated region
        $region61: #{tpu_custom_call.1} parent=59 // pred_check
          %p2543 = pneg %p157
        $region62: #{tpu_custom_call.1} parent=59 // pred_check_branch
          %2545 = sbr.rel (%p2543) target = $region64
        $region63: #{tpu_custom_call.1} parent=59 // pred_region
          %s2546 = sand.u32 %s142, 1
          %s2547 = scalar_lea.sflag [#allocation4], %s2546
          %s2548 = sand.u32 %s142, 1
          %s2549 = smul.addr %s2548, 256
          %s2550 = scalar_lea.vmem [#allocation8], %s2549
          %2551 = dma.done %s2547, 4096
        $region64: #{tpu_custom_call.1} parent=59 // pred_fallthru
          _
      $region60: #{tpu_custom_call.1} parent=5 // pred_fallthru
        _
    $region6: #{tpu_custom_call.1} parent=1 // loop_footer
      %s22 = sadd.s32 1, %s18
    $region7: #{tpu_custom_call.1} parent=1 // loop_footer_branch
      %17 = sbr.rel target = $region3
    $region8: #{tpu_custom_call.1} parent=1 // loop_exit
      _
    %2552 = vsyncpa [#allocation3], 1
    %s2553 = scalar_lea.sflag [#allocation3], 1
    %2554 = vsyncpa %s2553, 1
    %2555 = vsyncpa [#allocation6], 1
    %2556 = vsyncpa [#allocation4], 1
    %s2557 = scalar_lea.sflag [#allocation4], 1
    %2558 = vsyncpa %s2557, 1

</llo_original>
